<compile_context>
chip_gen: v5e
topology: v5e:2x2
jax: 0.10.0
libtpu: 0.0.40
codegen_flags: <defaults>
</compile_context>

<pallas_src>
import math

import jax
import jax.numpy as jnp
from jax.experimental import pallas as pl
from jax.experimental.pallas import tpu as pltpu


def _round_up(x, m):
    return ((x + m - 1) // m) * m


def _make_kernel(scale, kwin, tq, n_keys):
    """Build the per-query-tile kernel (static sizes captured by closure)."""
    nrel = 2 * kwin + 1

    def kernel(xmaj_ref, xmin_ref, wqT_ref, wkT_ref, wvT_ref, woT_ref,
               wk_relT_ref, y_ref, a_ref):
        # --- projections (MXU, f32 accumulation) ---------------------------
        q = jnp.dot(xmaj_ref[...], wqT_ref[...],
                    preferred_element_type=jnp.float32)        # (tq, dk)
        kproj = jnp.dot(xmin_ref[...], wkT_ref[...],
                        preferred_element_type=jnp.float32)    # (n, dk)
        v = jnp.dot(xmin_ref[...], wvT_ref[...],
                    preferred_element_type=jnp.float32)        # (n, dv)

        qs = q * scale                                         # (tq, dk)

        # --- content scores: contract dk of both (no K transpose) ----------
        s = jax.lax.dot_general(
            qs, kproj, (((1,), (1,)), ((), ())),
            preferred_element_type=jnp.float32)                # (tq, n)

        # --- relative-position scores (no (n, n, dk) tensor) ---------------
        # qr[i, r] = scale * <Q[i, :], wk_rel[r, :]>            (tq, 2k+1)
        qr = jnp.dot(qs, wk_relT_ref[...].astype(jnp.float32),
                     preferred_element_type=jnp.float32)

        q0 = pl.program_id(0) * tq
        row = q0 + jax.lax.broadcasted_iota(jnp.int32, (tq, n_keys), 0)
        col = jax.lax.broadcasted_iota(jnp.int32, (tq, n_keys), 1)
        rel = jnp.clip(col - row + kwin, 0, 2 * kwin)          # (tq, n) int32

        # Sr[i, j] = qr[i, rel[i, j]] via 2k+1 static selects (tiny band).
        sr = jnp.zeros((tq, n_keys), jnp.float32)
        for r in range(nrel):
            sr = jnp.where(rel == r, qr[:, r:r + 1], sr)

        s = s + sr

        # --- softmax (f32, reciprocal on the EUP slot) ----------------------
        s_max = jnp.max(s, axis=-1, keepdims=True)
        e = jnp.exp(s - s_max)
        denom = jnp.sum(e, axis=-1, keepdims=True)
        a = e * pl.reciprocal(denom, approx=False)
        a_ref[...] = a.astype(a_ref.dtype)

        # --- attention output + output projection ---------------------------
        y = jnp.dot(a, v, preferred_element_type=jnp.float32)  # (tq, dv)
        y_ref[...] = jnp.dot(y, woT_ref[...].astype(jnp.float32),
                             preferred_element_type=jnp.float32
                             ).astype(y_ref.dtype)

    return kernel


def relation_aware_attention(X_major, X_minor, WqT, WkT, WvT, WoT, wk_rel,
                             kwin, dk, *, tq=64):
    """Forward pass of RelationAwareAttention (pe='rpe'). Returns (Y, A)."""
    n = X_major.shape[0]
    n_keys = X_minor.shape[0]
    dm_major = X_major.shape[1]
    dm_minor = X_minor.shape[1]
    dv = WvT.shape[1]
    nrel = 2 * kwin + 1
    scale = 1.0 / math.sqrt(dk)

    # Query-tile size: multiple of 8 (sublane), capped at the padded seq len.
    tq = min(tq, _round_up(n, 8))
    n_pad = _round_up(n, tq)
    xmaj = X_major
    if n_pad != n:
        # Pad only the query axis; padded rows give a harmless uniform softmax
        # over the real keys and are sliced off below.  Keys are not padded.
        xmaj = jnp.pad(X_major, ((0, n_pad - n), (0, 0)))

    wk_relT = wk_rel.T  # (dk, 2k+1)

    kernel = _make_kernel(scale, kwin, tq, n_keys)

    grid_spec = pltpu.PrefetchScalarGridSpec(
        num_scalar_prefetch=0,
        grid=(n_pad // tq,),
        in_specs=[
            pl.BlockSpec((tq, dm_major), lambda i: (i, 0)),      # Q-tile stream
            pl.BlockSpec((n_keys, dm_minor), lambda i: (0, 0)),  # X_minor resident
            pl.BlockSpec((dm_major, dk), lambda i: (0, 0)),      # WqT
            pl.BlockSpec((dm_minor, dk), lambda i: (0, 0)),      # WkT
            pl.BlockSpec((dm_minor, dv), lambda i: (0, 0)),      # WvT
            pl.BlockSpec((dv, dv), lambda i: (0, 0)),            # WoT
            pl.BlockSpec((dk, nrel), lambda i: (0, 0)),          # wk_rel^T
        ],
        out_specs=(
            pl.BlockSpec((tq, dv), lambda i: (i, 0)),            # Y tile
            pl.BlockSpec((tq, n_keys), lambda i: (i, 0)),        # A tile
        ),
    )

    y, a = pl.pallas_call(
        kernel,
        out_shape=(
            jax.ShapeDtypeStruct((n_pad, dv), jnp.float32),
            jax.ShapeDtypeStruct((n_pad, n_keys), jnp.float32),
        ),
        grid_spec=grid_spec,
        compiler_params=pltpu.CompilerParams(
            dimension_semantics=("parallel",)),
    )(xmaj, X_minor, WqT, WkT, WvT, WoT, wk_relT)

    return y[:n], a[:n]


def _reference(X_major, X_minor, WqT, WkT, WvT, WoT, wk_rel, kwin, dk):
    """Pure-JAX reference matching the PyTorch module (pe='rpe', eval mode)."""
    n = X_major.shape[0]
    scale = 1.0 / math.sqrt(dk)
    Q = X_major @ WqT
    K = X_minor @ WkT
    V = X_minor @ WvT
    S = (Q * scale) @ K.T
    idx = jnp.clip(jnp.arange(n)[None, :] - jnp.arange(n)[:, None] + kwin,
                   0, 2 * kwin)
    Rk = wk_rel[idx]                                   # (n, n, dk)
    Sr = jnp.einsum("id,ijd->ij", Q * scale, Rk)
    S = S + Sr
    A = jax.nn.softmax(S, axis=-1)
    Y = (A @ V) @ WoT
    return Y, A


if __name__ == "__main__":
    # Small deterministic problem consistent with the module (max_length=140).
    n = 120          # sequence length -> 2 query tiles of 64 (one padded)
    dm_major = 32
    dm_minor = 24
    dk = 16
    dv = 16
    kwin = 4         # relative-position clipping window -> 2k+1 = 9 embeddings

    key = jax.random.PRNGKey(0)
    ks = jax.random.split(key, 7)

    X_major = jax.random.normal(ks[0], (n, dm_major), dtype=jnp.float32)
    X_minor = jax.random.normal(ks[1], (n, dm_minor), dtype=jnp.float32)

    # Linear layers (bias=False). PyTorch stores weight as (out, in); pass W^T.
    def _lin_init(k, fan_in, fan_out):
        bound = 1.0 / math.sqrt(fan_in)
        return jax.random.uniform(k, (fan_in, fan_out), jnp.float32, -bound, bound)

    WqT = _lin_init(ks[2], dm_major, dk)
    WkT = _lin_init(ks[3], dm_minor, dk)
    WvT = _lin_init(ks[4], dm_minor, dv)
    WoT = _lin_init(ks[5], dv, dv)

    # Relative-position representations: (2k+1, dk), xavier-uniform, relu gain.
    gain = math.sqrt(2.0)
    bound = gain * math.sqrt(6.0 / ((2 * kwin + 1) + dk))
    wk_rel = jax.random.uniform(ks[6], (2 * kwin + 1, dk), jnp.float32,
                                -bound, bound)

    Y, A = relation_aware_attention(X_major, X_minor, WqT, WkT, WvT, WoT,
                                    wk_rel, kwin, dk, tq=64)
    jax.block_until_ready(Y)
    jax.block_until_ready(A)

    Y_ref, A_ref = _reference(X_major, X_minor, WqT, WkT, WvT, WoT,
                              wk_rel, kwin, dk)
    assert jnp.allclose(Y, Y_ref, atol=2e-4, rtol=2e-4), "Y mismatch"
    assert jnp.allclose(A, A_ref, atol=2e-5, rtol=1e-4), "A mismatch"

    print("KERNEL_OK")
</pallas_src>

<mosaic_0001>
module attributes {stable_mosaic.version = 11 : i64} {
  func.func @kernel(%arg0: i32, %arg1: memref<64x32xf32, #tpu.memory_space<vmem>>, %arg2: memref<120x24xf32, #tpu.memory_space<vmem>>, %arg3: memref<32x16xf32, #tpu.memory_space<vmem>>, %arg4: memref<24x16xf32, #tpu.memory_space<vmem>>, %arg5: memref<24x16xf32, #tpu.memory_space<vmem>>, %arg6: memref<16x16xf32, #tpu.memory_space<vmem>>, %arg7: memref<16x9xf32, #tpu.memory_space<vmem>>, %arg8: memref<64x16xf32, #tpu.memory_space<vmem>>, %arg9: memref<64x120xf32, #tpu.memory_space<vmem>>) attributes {dimension_semantics = [#tpu.dimension_semantics<parallel>], iteration_bounds = array<i64: 2>, scalar_prefetch = 0 : i64, scratch_operands = 0 : i64, tpu.core_type = #tpu.core_type<tc>, window_params = [{transform_indices = @transform_0, window_bounds = array<i64: 64, 32>}, {pipeline_mode = #tpu.pipeline_mode<synchronous>, transform_indices = @transform_1, window_bounds = array<i64: 120, 24>}, {pipeline_mode = #tpu.pipeline_mode<synchronous>, transform_indices = @transform_2, window_bounds = array<i64: 32, 16>}, {pipeline_mode = #tpu.pipeline_mode<synchronous>, transform_indices = @transform_3, window_bounds = array<i64: 24, 16>}, {pipeline_mode = #tpu.pipeline_mode<synchronous>, transform_indices = @transform_4, window_bounds = array<i64: 24, 16>}, {pipeline_mode = #tpu.pipeline_mode<synchronous>, transform_indices = @transform_5, window_bounds = array<i64: 16, 16>}, {pipeline_mode = #tpu.pipeline_mode<synchronous>, transform_indices = @transform_6, window_bounds = array<i64: 16, 9>}, {transform_indices = @transform_7, window_bounds = array<i64: 64, 16>}, {transform_indices = @transform_8, window_bounds = array<i64: 64, 120>}]} {
    %c0 = arith.constant 0 : index
    %c0_0 = arith.constant 0 : index
    %0 = vector.load %arg1[%c0, %c0_0] : memref<64x32xf32, #tpu.memory_space<vmem>>, vector<64x32xf32>
    %c0_1 = arith.constant 0 : index
    %c0_2 = arith.constant 0 : index
    %1 = vector.load %arg3[%c0_1, %c0_2] : memref<32x16xf32, #tpu.memory_space<vmem>>, vector<32x16xf32>
    %cst = arith.constant dense<0.000000e+00> : vector<64x16xf32>
    %2 = tpu.matmul %0, %1, %cst {dimension_numbers = #tpu.dot_dimension_numbers<[1], [0], [0], [1], [0, 0, 1, 1], [], []>} : vector<64x32xf32>, vector<32x16xf32>, vector<64x16xf32> -> vector<64x16xf32>
    %c0_3 = arith.constant 0 : index
    %c0_4 = arith.constant 0 : index
    %3 = vector.load %arg2[%c0_3, %c0_4] : memref<120x24xf32, #tpu.memory_space<vmem>>, vector<120x24xf32>
    %c0_5 = arith.constant 0 : index
    %c0_6 = arith.constant 0 : index
    %4 = vector.load %arg4[%c0_5, %c0_6] : memref<24x16xf32, #tpu.memory_space<vmem>>, vector<24x16xf32>
    %cst_7 = arith.constant dense<0.000000e+00> : vector<120x16xf32>
    %5 = tpu.matmul %3, %4, %cst_7 {dimension_numbers = #tpu.dot_dimension_numbers<[1], [0], [0], [1], [0, 0, 1, 1], [], []>} : vector<120x24xf32>, vector<24x16xf32>, vector<120x16xf32> -> vector<120x16xf32>
    %c0_8 = arith.constant 0 : index
    %c0_9 = arith.constant 0 : index
    %6 = vector.load %arg2[%c0_8, %c0_9] : memref<120x24xf32, #tpu.memory_space<vmem>>, vector<120x24xf32>
    %c0_10 = arith.constant 0 : index
    %c0_11 = arith.constant 0 : index
    %7 = vector.load %arg5[%c0_10, %c0_11] : memref<24x16xf32, #tpu.memory_space<vmem>>, vector<24x16xf32>
    %cst_12 = arith.constant dense<0.000000e+00> : vector<120x16xf32>
    %8 = tpu.matmul %6, %7, %cst_12 {dimension_numbers = #tpu.dot_dimension_numbers<[1], [0], [0], [1], [0, 0, 1, 1], [], []>} : vector<120x24xf32>, vector<24x16xf32>, vector<120x16xf32> -> vector<120x16xf32>
    %cst_13 = arith.constant 2.500000e-01 : f32
    %9 = vector.broadcast %cst_13 : f32 to vector<64x16xf32>
    %10 = arith.mulf %2, %9 : vector<64x16xf32>
    %cst_14 = arith.constant dense<0.000000e+00> : vector<64x120xf32>
    %11 = tpu.matmul %10, %5, %cst_14 {dimension_numbers = #tpu.dot_dimension_numbers<[1], [1], [0], [0], [0, 0, 1, 0], [], []>} : vector<64x16xf32>, vector<120x16xf32>, vector<64x120xf32> -> vector<64x120xf32>
    %c0_15 = arith.constant 0 : index
    %c0_16 = arith.constant 0 : index
    %12 = vector.load %arg7[%c0_15, %c0_16] : memref<16x9xf32, #tpu.memory_space<vmem>>, vector<16x9xf32>
    %cst_17 = arith.constant dense<0.000000e+00> : vector<64x9xf32>
    %13 = tpu.matmul %10, %12, %cst_17 {dimension_numbers = #tpu.dot_dimension_numbers<[1], [0], [0], [1], [0, 0, 1, 1], [], []>} : vector<64x16xf32>, vector<16x9xf32>, vector<64x9xf32> -> vector<64x9xf32>
    %c64_i32 = arith.constant 64 : i32
    %14 = arith.muli %arg0, %c64_i32 : i32
    %15 = tpu.iota {dimensions = array<i32: 0>} : vector<64x120xi32>
    %16 = vector.broadcast %14 : i32 to vector<64x120xi32>
    %17 = arith.addi %16, %15 : vector<64x120xi32>
    %18 = tpu.iota {dimensions = array<i32: 1>} : vector<64x120xi32>
    %19 = arith.subi %18, %17 : vector<64x120xi32>
    %c4_i32 = arith.constant 4 : i32
    %20 = vector.broadcast %c4_i32 : i32 to vector<64x120xi32>
    %21 = arith.addi %19, %20 : vector<64x120xi32>
    %c0_i32 = arith.constant 0 : i32
    %c8_i32 = arith.constant 8 : i32
    %22 = vector.broadcast %c0_i32 : i32 to vector<64x120xi32>
    %23 = arith.maxsi %22, %21 : vector<64x120xi32>
    %24 = vector.broadcast %c8_i32 : i32 to vector<64x120xi32>
    %25 = arith.minsi %24, %23 : vector<64x120xi32>
    %cst_18 = arith.constant 0.000000e+00 : f32
    %26 = vector.broadcast %cst_18 : f32 to vector<64x120xf32>
    %c0_i32_19 = arith.constant 0 : i32
    %27 = vector.broadcast %c0_i32_19 : i32 to vector<64x120xi32>
    %28 = arith.cmpi eq, %25, %27 : vector<64x120xi32>
    %29 = vector.extract_strided_slice %13 {offsets = [0, 0], sizes = [64, 1], strides = [1, 1]} : vector<64x9xf32> to vector<64x1xf32>
    %30 = vector.shape_cast %29 : vector<64x1xf32> to vector<64x1xf32>
    %31 = vector.broadcast %30 : vector<64x1xf32> to vector<64x120xf32>
    %32 = arith.select %28, %31, %26 : vector<64x120xi1>, vector<64x120xf32>
    %c1_i32 = arith.constant 1 : i32
    %33 = vector.broadcast %c1_i32 : i32 to vector<64x120xi32>
    %34 = arith.cmpi eq, %25, %33 : vector<64x120xi32>
    %35 = vector.extract_strided_slice %13 {offsets = [0, 1], sizes = [64, 1], strides = [1, 1]} : vector<64x9xf32> to vector<64x1xf32>
    %36 = vector.shape_cast %35 : vector<64x1xf32> to vector<64x1xf32>
    %37 = vector.broadcast %36 : vector<64x1xf32> to vector<64x120xf32>
    %38 = arith.select %34, %37, %32 : vector<64x120xi1>, vector<64x120xf32>
    %c2_i32 = arith.constant 2 : i32
    %39 = vector.broadcast %c2_i32 : i32 to vector<64x120xi32>
    %40 = arith.cmpi eq, %25, %39 : vector<64x120xi32>
    %41 = vector.extract_strided_slice %13 {offsets = [0, 2], sizes = [64, 1], strides = [1, 1]} : vector<64x9xf32> to vector<64x1xf32>
    %42 = vector.shape_cast %41 : vector<64x1xf32> to vector<64x1xf32>
    %43 = vector.broadcast %42 : vector<64x1xf32> to vector<64x120xf32>
    %44 = arith.select %40, %43, %38 : vector<64x120xi1>, vector<64x120xf32>
    %c3_i32 = arith.constant 3 : i32
    %45 = vector.broadcast %c3_i32 : i32 to vector<64x120xi32>
    %46 = arith.cmpi eq, %25, %45 : vector<64x120xi32>
    %47 = vector.extract_strided_slice %13 {offsets = [0, 3], sizes = [64, 1], strides = [1, 1]} : vector<64x9xf32> to vector<64x1xf32>
    %48 = vector.shape_cast %47 : vector<64x1xf32> to vector<64x1xf32>
    %49 = vector.broadcast %48 : vector<64x1xf32> to vector<64x120xf32>
    %50 = arith.select %46, %49, %44 : vector<64x120xi1>, vector<64x120xf32>
    %c4_i32_20 = arith.constant 4 : i32
    %51 = vector.broadcast %c4_i32_20 : i32 to vector<64x120xi32>
    %52 = arith.cmpi eq, %25, %51 : vector<64x120xi32>
    %53 = vector.extract_strided_slice %13 {offsets = [0, 4], sizes = [64, 1], strides = [1, 1]} : vector<64x9xf32> to vector<64x1xf32>
    %54 = vector.shape_cast %53 : vector<64x1xf32> to vector<64x1xf32>
    %55 = vector.broadcast %54 : vector<64x1xf32> to vector<64x120xf32>
    %56 = arith.select %52, %55, %50 : vector<64x120xi1>, vector<64x120xf32>
    %c5_i32 = arith.constant 5 : i32
    %57 = vector.broadcast %c5_i32 : i32 to vector<64x120xi32>
    %58 = arith.cmpi eq, %25, %57 : vector<64x120xi32>
    %59 = vector.extract_strided_slice %13 {offsets = [0, 5], sizes = [64, 1], strides = [1, 1]} : vector<64x9xf32> to vector<64x1xf32>
    %60 = vector.shape_cast %59 : vector<64x1xf32> to vector<64x1xf32>
    %61 = vector.broadcast %60 : vector<64x1xf32> to vector<64x120xf32>
    %62 = arith.select %58, %61, %56 : vector<64x120xi1>, vector<64x120xf32>
    %c6_i32 = arith.constant 6 : i32
    %63 = vector.broadcast %c6_i32 : i32 to vector<64x120xi32>
    %64 = arith.cmpi eq, %25, %63 : vector<64x120xi32>
    %65 = vector.extract_strided_slice %13 {offsets = [0, 6], sizes = [64, 1], strides = [1, 1]} : vector<64x9xf32> to vector<64x1xf32>
    %66 = vector.shape_cast %65 : vector<64x1xf32> to vector<64x1xf32>
    %67 = vector.broadcast %66 : vector<64x1xf32> to vector<64x120xf32>
    %68 = arith.select %64, %67, %62 : vector<64x120xi1>, vector<64x120xf32>
    %c7_i32 = arith.constant 7 : i32
    %69 = vector.broadcast %c7_i32 : i32 to vector<64x120xi32>
    %70 = arith.cmpi eq, %25, %69 : vector<64x120xi32>
    %71 = vector.extract_strided_slice %13 {offsets = [0, 7], sizes = [64, 1], strides = [1, 1]} : vector<64x9xf32> to vector<64x1xf32>
    %72 = vector.shape_cast %71 : vector<64x1xf32> to vector<64x1xf32>
    %73 = vector.broadcast %72 : vector<64x1xf32> to vector<64x120xf32>
    %74 = arith.select %70, %73, %68 : vector<64x120xi1>, vector<64x120xf32>
    %c8_i32_21 = arith.constant 8 : i32
    %75 = vector.broadcast %c8_i32_21 : i32 to vector<64x120xi32>
    %76 = arith.cmpi eq, %25, %75 : vector<64x120xi32>
    %77 = vector.extract_strided_slice %13 {offsets = [0, 8], sizes = [64, 1], strides = [1, 1]} : vector<64x9xf32> to vector<64x1xf32>
    %78 = vector.shape_cast %77 : vector<64x1xf32> to vector<64x1xf32>
    %79 = vector.broadcast %78 : vector<64x1xf32> to vector<64x120xf32>
    %80 = arith.select %76, %79, %74 : vector<64x120xi1>, vector<64x120xf32>
    %81 = arith.addf %11, %80 : vector<64x120xf32>
    %cst_22 = arith.constant dense<0xFF800000> : vector<64xf32>
    %82 = vector.multi_reduction <maximumf>, %81, %cst_22 [1] : vector<64x120xf32> to vector<64xf32>
    %83 = vector.shape_cast %82 : vector<64xf32> to vector<64x1xf32>
    %84 = vector.broadcast %83 : vector<64x1xf32> to vector<64x120xf32>
    %85 = arith.subf %81, %84 : vector<64x120xf32>
    %86 = math.exp %85 : vector<64x120xf32>
    %cst_23 = arith.constant dense<0.000000e+00> : vector<64xf32>
    %87 = vector.multi_reduction <add>, %86, %cst_23 [1] : vector<64x120xf32> to vector<64xf32>
    %88 = vector.shape_cast %87 : vector<64xf32> to vector<64x1xf32>
    %89 = tpu.reciprocal %88 : vector<64x1xf32> -> vector<64x1xf32>
    %90 = vector.broadcast %89 : vector<64x1xf32> to vector<64x120xf32>
    %91 = arith.mulf %86, %90 : vector<64x120xf32>
    %c0_24 = arith.constant 0 : index
    %c0_25 = arith.constant 0 : index
    %92 = vector.load %arg9[%c0_24, %c0_25] : memref<64x120xf32, #tpu.memory_space<vmem>>, vector<64x120xf32>
    tpu.vector_store %arg9[%c0_24, %c0_25], %91 {strides = array<i32>} : memref<64x120xf32, #tpu.memory_space<vmem>>, vector<64x120xf32>,
    %cst_26 = arith.constant dense<0.000000e+00> : vector<64x16xf32>
    %93 = tpu.matmul %91, %8, %cst_26 {dimension_numbers = #tpu.dot_dimension_numbers<[1], [0], [0], [1], [0, 0, 1, 1], [], []>} : vector<64x120xf32>, vector<120x16xf32>, vector<64x16xf32> -> vector<64x16xf32>
    %c0_27 = arith.constant 0 : index
    %c0_28 = arith.constant 0 : index
    %94 = vector.load %arg6[%c0_27, %c0_28] : memref<16x16xf32, #tpu.memory_space<vmem>>, vector<16x16xf32>
    %cst_29 = arith.constant dense<0.000000e+00> : vector<64x16xf32>
    %95 = tpu.matmul %93, %94, %cst_29 {dimension_numbers = #tpu.dot_dimension_numbers<[1], [0], [0], [1], [0, 0, 1, 1], [], []>} : vector<64x16xf32>, vector<16x16xf32>, vector<64x16xf32> -> vector<64x16xf32>
    %c0_30 = arith.constant 0 : index
    %c0_31 = arith.constant 0 : index
    %96 = vector.load %arg8[%c0_30, %c0_31] : memref<64x16xf32, #tpu.memory_space<vmem>>, vector<64x16xf32>
    tpu.vector_store %arg8[%c0_30, %c0_31], %95 {strides = array<i32>} : memref<64x16xf32, #tpu.memory_space<vmem>>, vector<64x16xf32>,
    return
  }
  func.func @transform_0(%arg0: i32) -> (i32, i32) {
    %c0_i32 = arith.constant 0 : i32
    %c0_i32_0 = arith.constant 0 : i32
    return %arg0, %c0_i32 : i32, i32
  }
  func.func @transform_1(%arg0: i32) -> (i32, i32) {
    %c0_i32 = arith.constant 0 : i32
    %c0_i32_0 = arith.constant 0 : i32
    %c0_i32_1 = arith.constant 0 : i32
    return %c0_i32, %c0_i32_0 : i32, i32
  }
  func.func @transform_2(%arg0: i32) -> (i32, i32) {
    %c0_i32 = arith.constant 0 : i32
    %c0_i32_0 = arith.constant 0 : i32
    %c0_i32_1 = arith.constant 0 : i32
    return %c0_i32, %c0_i32_0 : i32, i32
  }
  func.func @transform_3(%arg0: i32) -> (i32, i32) {
    %c0_i32 = arith.constant 0 : i32
    %c0_i32_0 = arith.constant 0 : i32
    %c0_i32_1 = arith.constant 0 : i32
    return %c0_i32, %c0_i32_0 : i32, i32
  }
  func.func @transform_4(%arg0: i32) -> (i32, i32) {
    %c0_i32 = arith.constant 0 : i32
    %c0_i32_0 = arith.constant 0 : i32
    %c0_i32_1 = arith.constant 0 : i32
    return %c0_i32, %c0_i32_0 : i32, i32
  }
  func.func @transform_5(%arg0: i32) -> (i32, i32) {
    %c0_i32 = arith.constant 0 : i32
    %c0_i32_0 = arith.constant 0 : i32
    %c0_i32_1 = arith.constant 0 : i32
    return %c0_i32, %c0_i32_0 : i32, i32
  }
  func.func @transform_6(%arg0: i32) -> (i32, i32) {
    %c0_i32 = arith.constant 0 : i32
    %c0_i32_0 = arith.constant 0 : i32
    %c0_i32_1 = arith.constant 0 : i32
    return %c0_i32, %c0_i32_0 : i32, i32
  }
  func.func @transform_7(%arg0: i32) -> (i32, i32) {
    %c0_i32 = arith.constant 0 : i32
    %c0_i32_0 = arith.constant 0 : i32
    return %arg0, %c0_i32 : i32, i32
  }
  func.func @transform_8(%arg0: i32) -> (i32, i32) {
    %c0_i32 = arith.constant 0 : i32
    %c0_i32_0 = arith.constant 0 : i32
    return %arg0, %c0_i32 : i32, i32
  }
}

</mosaic_0001>

<llo_original>
// kernel: tpu_custom_call.1
$region0: #{tpu_custom_call.1}
  #allocation0 [shape = 'u32[]', space=smem, size = 0x4, offset = 0x4, fixed_abs, tag = 'smem constant byte address 0x4 - core index']
  #allocation1 [shape = 'u32[72,128]{1,0:T(1,128)}', space=vmem, size = 0x9000, scoped, tag = 'internal scratch']
  %s0 = inlined_call_operand.vmem [shape: f32[128,32], index: 0, kind: input, shape index: {}]
  %s1 = inlined_call_operand.vmem [shape: f32[120,24], index: 1, kind: input, shape index: {}]
  %s2 = inlined_call_operand.vmem [shape: f32[32,16], index: 2, kind: input, shape index: {}]
  %s3 = inlined_call_operand.vmem [shape: f32[24,16], index: 3, kind: input, shape index: {}]
  %s4 = inlined_call_operand.vmem [shape: f32[24,16], index: 4, kind: input, shape index: {}]
  %s5 = inlined_call_operand.vmem [shape: f32[16,16], index: 5, kind: input, shape index: {}]
  %s6 = inlined_call_operand.vmem [shape: f32[16,9], index: 6, kind: input, shape index: {}]
  %s7 = inlined_call_operand.vmem [shape: f32[128,16], index: 7, kind: output, shape index: {0}]
  %s8 = inlined_call_operand.vmem [shape: f32[128,120], index: 8, kind: output, shape index: {1}]
  %9 = xla_tuple %s7, %s8
  %s10 = sld [smem:[#allocation0]]
  $region69: #{tpu_custom_call.1} parent=0
    _
  %s12 = ssub.s32 1, %s10
  %s13 = scalar_select 0, %s12, %s10
  loop: start=0, step=1, limit=4
  $region2: #{tpu_custom_call.1} parent=0 // loop_pre_header
    _
  $region3: #{tpu_custom_call.1} parent=0 // loop_header
    %s15 = sphi 0, %s19
    %p16 = scmp.ge.s32.totalorder %s15, 4
    %s25 = sphi 0, %s27
    %s28 = sphi 0, %s25
    %s29 = sphi 0, %s28
    %s45 = sphi 0, %s29
    %s49 = sphi 0, %s49
    %s51 = sphi 0, %s49
    %s52 = sphi 0, %s51
    %s66 = sphi 0, %s52
    %s70 = sphi 0, %s70
    %s72 = sphi 0, %s70
    %s73 = sphi 0, %s72
    %s87 = sphi 0, %s73
    %s91 = sphi 0, %s91
    %s93 = sphi 0, %s91
    %s94 = sphi 0, %s93
    %s108 = sphi 0, %s94
    %s112 = sphi 0, %s112
    %s114 = sphi 0, %s112
    %s115 = sphi 0, %s114
    %s129 = sphi 0, %s115
    %s133 = sphi 0, %s133
    %s135 = sphi 0, %s133
    %s136 = sphi 0, %s135
    %s150 = sphi 0, %s136
    %s154 = sphi 0, %s154
    %s156 = sphi 0, %s154
    %s157 = sphi 0, %s156
    %s171 = sphi 0, %s157
    %s177 = sphi 0, %s179
    %s180 = sphi 0, %s177
    %s181 = sphi 0, %s180
    %s197 = sphi 0, %s181
    %s203 = sphi 0, %s205
    %s206 = sphi 0, %s203
    %s207 = sphi 0, %s206
    %s223 = sphi 0, %s207
  $region4: #{tpu_custom_call.1} parent=0 // loop_header_branch
    %18 = sbr.rel (%p16) target = $region8
  $region5: #{tpu_custom_call.1} parent=0 // loop_body
    %s20 = ssub.s32 %s15, 1
    %s21 = ssub.s32 %s15, 2
    %s22 = sadd.s32 %s15, 1
    %s23 = ssub.s32 %s15, %s22
    %p24 = scmp.eq.s32.totalorder %s23, 0
    %s26 = sadd.s32 %s25, 1
    %s27 = scalar_select %p24, %s25, %s26
    %p30 = pneg %p24
    %p31 = scmp.eq.s32.totalorder %s15, 1
    %p32 = por %p30, %p31
    %p33 = scmp.ne.s32.totalorder %s25, %s28
    %p34 = scmp.eq.s32.totalorder %s15, 0
    %p35 = por %p33, %p34
    %p36 = scmp.ne.s32.totalorder %s25, %s28
    %p37 = scmp.eq.s32.totalorder %s20, 1
    %p38 = por %p36, %p37
    %p39 = scmp.ne.s32.totalorder %s28, %s29
    %p40 = scmp.eq.s32.totalorder %s20, 0
    %p41 = por %p39, %p40
    %p42 = scmp.ne.s32.totalorder %s28, %s29
    %p43 = scmp.eq.s32.totalorder %s21, 1
    %p44 = por %p42, %p43
    %p46 = scmp.ne.s32.totalorder %s29, %s45
    %p47 = scmp.eq.s32.totalorder %s21, 0
    %p48 = por %p46, %p47
    %s50 = sadd.s32 %s49, 1
    %p53 = scmp.eq.s32.totalorder %s15, 1
    %p54 = scmp.ne.s32.totalorder %s49, %s51
    %p55 = scmp.eq.s32.totalorder %s15, 0
    %p56 = por %p54, %p55
    %p57 = scmp.ne.s32.totalorder %s49, %s51
    %p58 = scmp.eq.s32.totalorder %s20, 1
    %p59 = por %p57, %p58
    %p60 = scmp.ne.s32.totalorder %s51, %s52
    %p61 = scmp.eq.s32.totalorder %s20, 0
    %p62 = por %p60, %p61
    %p63 = scmp.ne.s32.totalorder %s51, %s52
    %p64 = scmp.eq.s32.totalorder %s21, 1
    %p65 = por %p63, %p64
    %p67 = scmp.ne.s32.totalorder %s52, %s66
    %p68 = scmp.eq.s32.totalorder %s21, 0
    %p69 = por %p67, %p68
    %s71 = sadd.s32 %s70, 1
    %p74 = scmp.eq.s32.totalorder %s15, 1
    %p75 = scmp.ne.s32.totalorder %s70, %s72
    %p76 = scmp.eq.s32.totalorder %s15, 0
    %p77 = por %p75, %p76
    %p78 = scmp.ne.s32.totalorder %s70, %s72
    %p79 = scmp.eq.s32.totalorder %s20, 1
    %p80 = por %p78, %p79
    %p81 = scmp.ne.s32.totalorder %s72, %s73
    %p82 = scmp.eq.s32.totalorder %s20, 0
    %p83 = por %p81, %p82
    %p84 = scmp.ne.s32.totalorder %s72, %s73
    %p85 = scmp.eq.s32.totalorder %s21, 1
    %p86 = por %p84, %p85
    %p88 = scmp.ne.s32.totalorder %s73, %s87
    %p89 = scmp.eq.s32.totalorder %s21, 0
    %p90 = por %p88, %p89
    %s92 = sadd.s32 %s91, 1
    %p95 = scmp.eq.s32.totalorder %s15, 1
    %p96 = scmp.ne.s32.totalorder %s91, %s93
    %p97 = scmp.eq.s32.totalorder %s15, 0
    %p98 = por %p96, %p97
    %p99 = scmp.ne.s32.totalorder %s91, %s93
    %p100 = scmp.eq.s32.totalorder %s20, 1
    %p101 = por %p99, %p100
    %p102 = scmp.ne.s32.totalorder %s93, %s94
    %p103 = scmp.eq.s32.totalorder %s20, 0
    %p104 = por %p102, %p103
    %p105 = scmp.ne.s32.totalorder %s93, %s94
    %p106 = scmp.eq.s32.totalorder %s21, 1
    %p107 = por %p105, %p106
    %p109 = scmp.ne.s32.totalorder %s94, %s108
    %p110 = scmp.eq.s32.totalorder %s21, 0
    %p111 = por %p109, %p110
    %s113 = sadd.s32 %s112, 1
    %p116 = scmp.eq.s32.totalorder %s15, 1
    %p117 = scmp.ne.s32.totalorder %s112, %s114
    %p118 = scmp.eq.s32.totalorder %s15, 0
    %p119 = por %p117, %p118
    %p120 = scmp.ne.s32.totalorder %s112, %s114
    %p121 = scmp.eq.s32.totalorder %s20, 1
    %p122 = por %p120, %p121
    %p123 = scmp.ne.s32.totalorder %s114, %s115
    %p124 = scmp.eq.s32.totalorder %s20, 0
    %p125 = por %p123, %p124
    %p126 = scmp.ne.s32.totalorder %s114, %s115
    %p127 = scmp.eq.s32.totalorder %s21, 1
    %p128 = por %p126, %p127
    %p130 = scmp.ne.s32.totalorder %s115, %s129
    %p131 = scmp.eq.s32.totalorder %s21, 0
    %p132 = por %p130, %p131
    %s134 = sadd.s32 %s133, 1
    %p137 = scmp.eq.s32.totalorder %s15, 1
    %p138 = scmp.ne.s32.totalorder %s133, %s135
    %p139 = scmp.eq.s32.totalorder %s15, 0
    %p140 = por %p138, %p139
    %p141 = scmp.ne.s32.totalorder %s133, %s135
    %p142 = scmp.eq.s32.totalorder %s20, 1
    %p143 = por %p141, %p142
    %p144 = scmp.ne.s32.totalorder %s135, %s136
    %p145 = scmp.eq.s32.totalorder %s20, 0
    %p146 = por %p144, %p145
    %p147 = scmp.ne.s32.totalorder %s135, %s136
    %p148 = scmp.eq.s32.totalorder %s21, 1
    %p149 = por %p147, %p148
    %p151 = scmp.ne.s32.totalorder %s136, %s150
    %p152 = scmp.eq.s32.totalorder %s21, 0
    %p153 = por %p151, %p152
    %s155 = sadd.s32 %s154, 1
    %p158 = scmp.eq.s32.totalorder %s15, 1
    %p159 = scmp.ne.s32.totalorder %s154, %s156
    %p160 = scmp.eq.s32.totalorder %s15, 0
    %p161 = por %p159, %p160
    %p162 = scmp.ne.s32.totalorder %s154, %s156
    %p163 = scmp.eq.s32.totalorder %s20, 1
    %p164 = por %p162, %p163
    %p165 = scmp.ne.s32.totalorder %s156, %s157
    %p166 = scmp.eq.s32.totalorder %s20, 0
    %p167 = por %p165, %p166
    %p168 = scmp.ne.s32.totalorder %s156, %s157
    %p169 = scmp.eq.s32.totalorder %s21, 1
    %p170 = por %p168, %p169
    %p172 = scmp.ne.s32.totalorder %s157, %s171
    %p173 = scmp.eq.s32.totalorder %s21, 0
    %p174 = por %p172, %p173
    %s175 = ssub.s32 %s15, %s22
    %p176 = scmp.eq.s32.totalorder %s175, 0
    %s178 = sadd.s32 %s177, 1
    %s179 = scalar_select %p176, %s177, %s178
    %p182 = pneg %p176
    %p183 = scmp.eq.s32.totalorder %s15, 1
    %p184 = por %p182, %p183
    %p185 = scmp.ne.s32.totalorder %s177, %s180
    %p186 = scmp.eq.s32.totalorder %s15, 0
    %p187 = por %p185, %p186
    %p188 = scmp.ne.s32.totalorder %s177, %s180
    %p189 = scmp.eq.s32.totalorder %s20, 1
    %p190 = por %p188, %p189
    %p191 = scmp.ne.s32.totalorder %s180, %s181
    %p192 = scmp.eq.s32.totalorder %s20, 0
    %p193 = por %p191, %p192
    %p194 = scmp.ne.s32.totalorder %s180, %s181
    %p195 = scmp.eq.s32.totalorder %s21, 1
    %p196 = por %p194, %p195
    %p198 = scmp.ne.s32.totalorder %s181, %s197
    %p199 = scmp.eq.s32.totalorder %s21, 0
    %p200 = por %p198, %p199
    %s201 = ssub.s32 %s15, %s22
    %p202 = scmp.eq.s32.totalorder %s201, 0
    %s204 = sadd.s32 %s203, 1
    %s205 = scalar_select %p202, %s203, %s204
    %p208 = pneg %p202
    %p209 = scmp.eq.s32.totalorder %s15, 1
    %p210 = por %p208, %p209
    %p211 = scmp.ne.s32.totalorder %s203, %s206
    %p212 = scmp.eq.s32.totalorder %s15, 0
    %p213 = por %p211, %p212
    %p214 = scmp.ne.s32.totalorder %s203, %s206
    %p215 = scmp.eq.s32.totalorder %s20, 1
    %p216 = por %p214, %p215
    %p217 = scmp.ne.s32.totalorder %s206, %s207
    %p218 = scmp.eq.s32.totalorder %s20, 0
    %p219 = por %p217, %p218
    %p220 = scmp.ne.s32.totalorder %s206, %s207
    %p221 = scmp.eq.s32.totalorder %s21, 1
    %p222 = por %p220, %p221
    %p224 = scmp.ne.s32.totalorder %s207, %s223
    %p225 = scmp.eq.s32.totalorder %s21, 0
    %p226 = por %p224, %p225
    %p227 = scmp.le.s32.totalorder 1, %s15
    %p228 = scmp.lt.s32.totalorder %s15, 3
    %p229 = pnand %p227, %p228
    %p230 = pneg %p229
    // Predicated region
    $region9: #{tpu_custom_call.1} parent=5 // pred_check
      _
    $region10: #{tpu_custom_call.1} parent=5 // pred_check_branch
      %232 = sbr.rel (%p229) target = $region12
    $region11: #{tpu_custom_call.1} parent=5 // pred_region
      %s233 = ssub.s32 %s15, 1
      // Predicated region
      $region13: #{tpu_custom_call.1} parent=11 // pred_check
        %p234 = pneg %p62
      $region14: #{tpu_custom_call.1} parent=11 // pred_check_branch
        %236 = sbr.rel (%p234) target = $region16
      $region15: #{tpu_custom_call.1} parent=11 // pred_region
        _
      $region16: #{tpu_custom_call.1} parent=11 // pred_fallthru
        _
      // Predicated region
      $region17: #{tpu_custom_call.1} parent=11 // pred_check
        %p237 = pneg %p83
      $region18: #{tpu_custom_call.1} parent=11 // pred_check_branch
        %239 = sbr.rel (%p237) target = $region20
      $region19: #{tpu_custom_call.1} parent=11 // pred_region
        _
      $region20: #{tpu_custom_call.1} parent=11 // pred_fallthru
        _
      // Predicated region
      $region21: #{tpu_custom_call.1} parent=11 // pred_check
        %p240 = pneg %p104
      $region22: #{tpu_custom_call.1} parent=11 // pred_check_branch
        %242 = sbr.rel (%p240) target = $region24
      $region23: #{tpu_custom_call.1} parent=11 // pred_region
        _
      $region24: #{tpu_custom_call.1} parent=11 // pred_fallthru
        _
      // Predicated region
      $region25: #{tpu_custom_call.1} parent=11 // pred_check
        %p243 = pneg %p125
      $region26: #{tpu_custom_call.1} parent=11 // pred_check_branch
        %245 = sbr.rel (%p243) target = $region28
      $region27: #{tpu_custom_call.1} parent=11 // pred_region
        _
      $region28: #{tpu_custom_call.1} parent=11 // pred_fallthru
        _
      // Predicated region
      $region29: #{tpu_custom_call.1} parent=11 // pred_check
        %p246 = pneg %p146
      $region30: #{tpu_custom_call.1} parent=11 // pred_check_branch
        %248 = sbr.rel (%p246) target = $region32
      $region31: #{tpu_custom_call.1} parent=11 // pred_region
        _
      $region32: #{tpu_custom_call.1} parent=11 // pred_fallthru
        _
      // Predicated region
      $region33: #{tpu_custom_call.1} parent=11 // pred_check
        %p249 = pneg %p167
      $region34: #{tpu_custom_call.1} parent=11 // pred_check_branch
        %251 = sbr.rel (%p249) target = $region36
      $region35: #{tpu_custom_call.1} parent=11 // pred_region
        _
      $region36: #{tpu_custom_call.1} parent=11 // pred_fallthru
        _
    $region12: #{tpu_custom_call.1} parent=5 // pred_fallthru
      _
    %p252 = scmp.lt.s32.totalorder %s15, 2
    // Predicated region
    $region37: #{tpu_custom_call.1} parent=5 // pred_check
      %p253 = pneg %p252
    $region38: #{tpu_custom_call.1} parent=5 // pred_check_branch
      %255 = sbr.rel (%p253) target = $region40
    $region39: #{tpu_custom_call.1} parent=5 // pred_region
      // Predicated region
      $region41: #{tpu_custom_call.1} parent=39 // pred_check
        %p256 = pneg %p35
      $region42: #{tpu_custom_call.1} parent=39 // pred_check_branch
        %258 = sbr.rel (%p256) target = $region44
      $region43: #{tpu_custom_call.1} parent=39 // pred_region
        %s259 = smul.u32 8, %s15
        %p260 = scmp.lt.s32.totalorder %s259, 15
        %s261 = scalar_select %p260, %s259, 15
        %s262 = smul.addr %s261, 8
        %s263 = scalar_lea.vmem %s0, %s262
        %s264 = smul.u32 8, %s15
      $region44: #{tpu_custom_call.1} parent=39 // pred_fallthru
        _
    $region40: #{tpu_custom_call.1} parent=5 // pred_fallthru
      _
    %p265 = scmp.le.s32.totalorder 1, %s15
    %p266 = scmp.lt.s32.totalorder %s15, 3
    %p267 = pnand %p265, %p266
    %p268 = pneg %p267
    // Predicated region
    $region45: #{tpu_custom_call.1} parent=5 // pred_check
      _
    $region46: #{tpu_custom_call.1} parent=5 // pred_check_branch
      %270 = sbr.rel (%p267) target = $region48
    $region47: #{tpu_custom_call.1} parent=5 // pred_region
      %s271 = ssub.s32 %s15, 1
      %s272 = smul.u32 8, %s20
      %p273 = scmp.lt.s32.totalorder %s272, 15
      %s274 = scalar_select %p273, %s272, 15
      %s275 = smul.addr %s274, 8
      %s276 = scalar_lea.vmem %s0, %s275
      %p277 = pneg %p41
      %p278 = pneg %p38
      %p279 = pneg %p62
      %p280 = pneg %p59
      %p281 = pneg %p83
      %p282 = pneg %p80
      %p283 = pneg %p104
      %p284 = pneg %p101
      %p285 = pneg %p125
      %p286 = pneg %p122
      %p287 = pneg %p146
      %p288 = pneg %p143
      %p289 = pneg %p167
      %p290 = pneg %p164
      %p291 = pneg %p193
      %p292 = pneg %p190
      %s293 = smul.u32 8, %s20
      %p294 = scmp.lt.s32.totalorder %s293, 15
      %s295 = scalar_select %p294, %s293, 15
      %s296 = smul.addr %s295, 8
      %s297 = scalar_lea.vmem %s7, %s296
      %p298 = pneg %p219
      %p299 = pneg %p216
      %s300 = smul.u32 8, %s20
      %p301 = scmp.lt.s32.totalorder %s300, 15
      %s302 = scalar_select %p301, %s300, 15
      %s303 = smul.addr %s302, 8
      %s304 = scalar_lea.vmem %s8, %s303
      %s305 = smul.u32 8, %s20
      %p306 = scmp.lt.s32.totalorder %s305, 15
      %s307 = scalar_select %p306, %s305, 15
      %s308 = smul.addr %s307, 8
      %s309 = scalar_lea.vmem %s0, %s308
      %s310 = smul.u32 8, %s20
      %s311 = smul.u32 8, %s20
      %p312 = scmp.lt.s32.totalorder %s311, 15
      %s313 = scalar_select %p312, %s311, 15
      %s314 = smul.addr %s313, 8
      %s315 = scalar_lea.vmem %s7, %s314
      %s316 = smul.u32 8, %s20
      %s317 = smul.u32 8, %s20
      %p318 = scmp.lt.s32.totalorder %s317, 15
      %s319 = scalar_select %p318, %s317, 15
      %s320 = smul.addr %s319, 8
      %s321 = scalar_lea.vmem %s8, %s320
      %s322 = smul.u32 8, %s20
      %v323 = vld [vmem:[%s309] sm:$0xff]
      %v324 = vld [vmem:[%s309 + $0x8] sm:$0xff]
      %v325 = vld [vmem:[%s309 + $0x10] sm:$0xff]
      %v326 = vld [vmem:[%s309 + $0x18] sm:$0xff]
      %v327 = vld [vmem:[%s309 + $0x20] sm:$0xff]
      %v328 = vld [vmem:[%s309 + $0x28] sm:$0xff]
      %v329 = vld [vmem:[%s309 + $0x30] sm:$0xff]
      %v330 = vld [vmem:[%s309 + $0x38] sm:$0xff]
      %v331 = vld [vmem:[%s2] sm:$0xff]
      %v332 = vld [vmem:[%s2 + $0x8] sm:$0xff]
      %v333 = vld [vmem:[%s2 + $0x10] sm:$0xff]
      %v334 = vld [vmem:[%s2 + $0x18] sm:$0xff]
      %vm335 = vcmask 261120
      %v337 = vsel %vm335, %v323, 0
      %v340 = vsel %vm335, %v324, 0
      %v343 = vsel %vm335, %v325, 0
      %v346 = vsel %vm335, %v326, 0
      %v349 = vsel %vm335, %v327, 0
      %v352 = vsel %vm335, %v328, 0
      %v355 = vsel %vm335, %v329, 0
      %v358 = vsel %vm335, %v330, 0
      %360 = vmatpush.msra.mxu0 0.0
      %361 = vmatpush.msra.mxu0 0.0
      %362 = vmatpush.msra.mxu0 0.0
      %363 = vmatpush.msra.mxu0 0.0
      %364 = vmatpush.msra.mxu0 0.0
      %365 = vmatpush.msra.mxu0 0.0
      %366 = vmatpush.msra.mxu0 0.0
      %367 = vmatpush.msra.mxu0 0.0
      %368 = vmatpush.msra.mxu0 0.0
      %369 = vmatpush.msra.mxu0 0.0
      %370 = vmatpush.msra.mxu0 0.0
      %371 = vmatpush.msra.mxu0 0.0
      %372 = vmatpush.msra.mxu0 %v334
      %373 = vmatpush.msra.mxu0 %v333
      %374 = vmatpush.msra.mxu0 %v332
      %375 = vmatpush.msra.mxu0 %v331
      %376 = vmatmul.f32.gmra.mxu0 %v337
      %v377 = vpop.f32.mrf.mxu0
      %v378 = vadd.f32 0.0, %v377
      %379 = vmatmul.f32.gmra.mxu0 %v340
      %v380 = vpop.f32.mrf.mxu0
      %v381 = vadd.f32 0.0, %v380
      %382 = vmatmul.f32.gmra.mxu0 %v343
      %v383 = vpop.f32.mrf.mxu0
      %v384 = vadd.f32 0.0, %v383
      %385 = vmatmul.f32.gmra.mxu0 %v346
      %v386 = vpop.f32.mrf.mxu0
      %v387 = vadd.f32 0.0, %v386
      %388 = vmatmul.f32.gmra.mxu0 %v349
      %v389 = vpop.f32.mrf.mxu0
      %v390 = vadd.f32 0.0, %v389
      %391 = vmatmul.f32.gmra.mxu0 %v352
      %v392 = vpop.f32.mrf.mxu0
      %v393 = vadd.f32 0.0, %v392
      %394 = vmatmul.f32.gmra.mxu0 %v355
      %v395 = vpop.f32.mrf.mxu0
      %v396 = vadd.f32 0.0, %v395
      %397 = vmatmul.f32.gmra.mxu0 %v358
      %v398 = vpop.f32.mrf.mxu0
      %v399 = vadd.f32 0.0, %v398
      %400 = vdwg.mxu0
      %v401 = vld [vmem:[%s1] sm:$0xff]
      %v402 = vld [vmem:[%s1 + $0x8] sm:$0xff]
      %v403 = vld [vmem:[%s1 + $0x10] sm:$0xff]
      %v404 = vld [vmem:[%s1 + $0x18] sm:$0xff]
      %v405 = vld [vmem:[%s1 + $0x20] sm:$0xff]
      %v406 = vld [vmem:[%s1 + $0x28] sm:$0xff]
      %v407 = vld [vmem:[%s1 + $0x30] sm:$0xff]
      %v408 = vld [vmem:[%s1 + $0x38] sm:$0xff]
      %v409 = vld [vmem:[%s1 + $0x40] sm:$0xff]
      %v410 = vld [vmem:[%s1 + $0x48] sm:$0xff]
      %v411 = vld [vmem:[%s1 + $0x50] sm:$0xff]
      %v412 = vld [vmem:[%s1 + $0x58] sm:$0xff]
      %v413 = vld [vmem:[%s1 + $0x60] sm:$0xff]
      %v414 = vld [vmem:[%s1 + $0x68] sm:$0xff]
      %v415 = vld [vmem:[%s1 + $0x70] sm:$0xff]
      %v416 = vld [vmem:[%s3] sm:$0xff]
      %v417 = vld [vmem:[%s3 + $0x8] sm:$0xff]
      %v418 = vld [vmem:[%s3 + $0x10] sm:$0xff]
      %vm419 = vcmask 195584
      %v421 = vsel %vm419, %v401, 0
      %v424 = vsel %vm419, %v402, 0
      %v427 = vsel %vm419, %v403, 0
      %v430 = vsel %vm419, %v404, 0
      %v433 = vsel %vm419, %v405, 0
      %v436 = vsel %vm419, %v406, 0
      %v439 = vsel %vm419, %v407, 0
      %v442 = vsel %vm419, %v408, 0
      %v445 = vsel %vm419, %v409, 0
      %v448 = vsel %vm419, %v410, 0
      %v451 = vsel %vm419, %v411, 0
      %v454 = vsel %vm419, %v412, 0
      %v457 = vsel %vm419, %v413, 0
      %v460 = vsel %vm419, %v414, 0
      %v463 = vsel %vm419, %v415, 0
      %465 = vmatpush.msra.mxu0 0.0
      %466 = vmatpush.msra.mxu0 0.0
      %467 = vmatpush.msra.mxu0 0.0
      %468 = vmatpush.msra.mxu0 0.0
      %469 = vmatpush.msra.mxu0 0.0
      %470 = vmatpush.msra.mxu0 0.0
      %471 = vmatpush.msra.mxu0 0.0
      %472 = vmatpush.msra.mxu0 0.0
      %473 = vmatpush.msra.mxu0 0.0
      %474 = vmatpush.msra.mxu0 0.0
      %475 = vmatpush.msra.mxu0 0.0
      %476 = vmatpush.msra.mxu0 0.0
      %477 = vmatpush.msra.mxu0 0.0
      %478 = vmatpush.msra.mxu0 %v418
      %479 = vmatpush.msra.mxu0 %v417
      %480 = vmatpush.msra.mxu0 %v416
      %481 = vmatmul.f32.gmra.mxu0 %v421
      %v482 = vpop.f32.mrf.mxu0
      %v483 = vadd.f32 0.0, %v482
      %484 = vmatmul.f32.gmra.mxu0 %v424
      %v485 = vpop.f32.mrf.mxu0
      %v486 = vadd.f32 0.0, %v485
      %487 = vmatmul.f32.gmra.mxu0 %v427
      %v488 = vpop.f32.mrf.mxu0
      %v489 = vadd.f32 0.0, %v488
      %490 = vmatmul.f32.gmra.mxu0 %v430
      %v491 = vpop.f32.mrf.mxu0
      %v492 = vadd.f32 0.0, %v491
      %493 = vmatmul.f32.gmra.mxu0 %v433
      %v494 = vpop.f32.mrf.mxu0
      %v495 = vadd.f32 0.0, %v494
      %496 = vmatmul.f32.gmra.mxu0 %v436
      %v497 = vpop.f32.mrf.mxu0
      %v498 = vadd.f32 0.0, %v497
      %499 = vmatmul.f32.gmra.mxu0 %v439
      %v500 = vpop.f32.mrf.mxu0
      %v501 = vadd.f32 0.0, %v500
      %502 = vmatmul.f32.gmra.mxu0 %v442
      %v503 = vpop.f32.mrf.mxu0
      %v504 = vadd.f32 0.0, %v503
      %505 = vmatmul.f32.gmra.mxu0 %v445
      %v506 = vpop.f32.mrf.mxu0
      %v507 = vadd.f32 0.0, %v506
      %508 = vmatmul.f32.gmra.mxu0 %v448
      %v509 = vpop.f32.mrf.mxu0
      %v510 = vadd.f32 0.0, %v509
      %511 = vmatmul.f32.gmra.mxu0 %v451
      %v512 = vpop.f32.mrf.mxu0
      %v513 = vadd.f32 0.0, %v512
      %514 = vmatmul.f32.gmra.mxu0 %v454
      %v515 = vpop.f32.mrf.mxu0
      %v516 = vadd.f32 0.0, %v515
      %517 = vmatmul.f32.gmra.mxu0 %v457
      %v518 = vpop.f32.mrf.mxu0
      %v519 = vadd.f32 0.0, %v518
      %520 = vmatmul.f32.gmra.mxu0 %v460
      %v521 = vpop.f32.mrf.mxu0
      %v522 = vadd.f32 0.0, %v521
      %523 = vmatmul.f32.gmra.mxu0 %v463
      %v524 = vpop.f32.mrf.mxu0
      %v525 = vadd.f32 0.0, %v524
      %526 = vdwg.mxu0
      %v527 = vld [vmem:[%s4] sm:$0xff]
      %v528 = vld [vmem:[%s4 + $0x8] sm:$0xff]
      %v529 = vld [vmem:[%s4 + $0x10] sm:$0xff]
      %530 = vmatpush.msra.mxu0 0.0
      %531 = vmatpush.msra.mxu0 0.0
      %532 = vmatpush.msra.mxu0 0.0
      %533 = vmatpush.msra.mxu0 0.0
      %534 = vmatpush.msra.mxu0 0.0
      %535 = vmatpush.msra.mxu0 0.0
      %536 = vmatpush.msra.mxu0 0.0
      %537 = vmatpush.msra.mxu0 0.0
      %538 = vmatpush.msra.mxu0 0.0
      %539 = vmatpush.msra.mxu0 0.0
      %540 = vmatpush.msra.mxu0 0.0
      %541 = vmatpush.msra.mxu0 0.0
      %542 = vmatpush.msra.mxu0 0.0
      %543 = vmatpush.msra.mxu0 %v529
      %544 = vmatpush.msra.mxu0 %v528
      %545 = vmatpush.msra.mxu0 %v527
      %546 = vmatmul.f32.gmra.mxu0 %v421
      %v547 = vpop.f32.mrf.mxu0
      %v548 = vadd.f32 0.0, %v547
      %549 = vmatmul.f32.gmra.mxu0 %v424
      %v550 = vpop.f32.mrf.mxu0
      %v551 = vadd.f32 0.0, %v550
      %552 = vmatmul.f32.gmra.mxu0 %v427
      %v553 = vpop.f32.mrf.mxu0
      %v554 = vadd.f32 0.0, %v553
      %555 = vmatmul.f32.gmra.mxu0 %v430
      %v556 = vpop.f32.mrf.mxu0
      %v557 = vadd.f32 0.0, %v556
      %558 = vmatmul.f32.gmra.mxu0 %v433
      %v559 = vpop.f32.mrf.mxu0
      %v560 = vadd.f32 0.0, %v559
      %561 = vmatmul.f32.gmra.mxu0 %v436
      %v562 = vpop.f32.mrf.mxu0
      %v563 = vadd.f32 0.0, %v562
      %564 = vmatmul.f32.gmra.mxu0 %v439
      %v565 = vpop.f32.mrf.mxu0
      %v566 = vadd.f32 0.0, %v565
      %567 = vmatmul.f32.gmra.mxu0 %v442
      %v568 = vpop.f32.mrf.mxu0
      %v569 = vadd.f32 0.0, %v568
      %570 = vmatmul.f32.gmra.mxu0 %v445
      %v571 = vpop.f32.mrf.mxu0
      %v572 = vadd.f32 0.0, %v571
      %573 = vmatmul.f32.gmra.mxu0 %v448
      %v574 = vpop.f32.mrf.mxu0
      %v575 = vadd.f32 0.0, %v574
      %576 = vmatmul.f32.gmra.mxu0 %v451
      %v577 = vpop.f32.mrf.mxu0
      %v578 = vadd.f32 0.0, %v577
      %579 = vmatmul.f32.gmra.mxu0 %v454
      %v580 = vpop.f32.mrf.mxu0
      %v581 = vadd.f32 0.0, %v580
      %582 = vmatmul.f32.gmra.mxu0 %v457
      %v583 = vpop.f32.mrf.mxu0
      %v584 = vadd.f32 0.0, %v583
      %585 = vmatmul.f32.gmra.mxu0 %v460
      %v586 = vpop.f32.mrf.mxu0
      %v587 = vadd.f32 0.0, %v586
      %588 = vmatmul.f32.gmra.mxu0 %v463
      %v589 = vpop.f32.mrf.mxu0
      %v590 = vadd.f32 0.0, %v589
      %591 = vdwg.mxu0
      %v592 = vmul.f32 %v378, 0.25
      %v593 = vmul.f32 %v381, 0.25
      %v594 = vmul.f32 %v384, 0.25
      %v595 = vmul.f32 %v387, 0.25
      %v596 = vmul.f32 %v390, 0.25
      %v597 = vmul.f32 %v393, 0.25
      %v598 = vmul.f32 %v396, 0.25
      %v599 = vmul.f32 %v399, 0.25
      %v600 = vld [vmem:[%s6] sm:$0xff]
      %v601 = vld [vmem:[%s6 + $0x8] sm:$0xff]
      %vm602 = vcmask 130048
      %v604 = vsel %vm602, %v592, 0
      %v607 = vsel %vm602, %v593, 0
      %v610 = vsel %vm602, %v594, 0
      %v613 = vsel %vm602, %v595, 0
      %v616 = vsel %vm602, %v596, 0
      %v619 = vsel %vm602, %v597, 0
      %v622 = vsel %vm602, %v598, 0
      %v625 = vsel %vm602, %v599, 0
      %627 = vmatpush.msra.mxu0 0.0
      %628 = vmatpush.msra.mxu0 0.0
      %629 = vmatpush.msra.mxu0 0.0
      %630 = vmatpush.msra.mxu0 0.0
      %631 = vmatpush.msra.mxu0 0.0
      %632 = vmatpush.msra.mxu0 0.0
      %633 = vmatpush.msra.mxu0 0.0
      %634 = vmatpush.msra.mxu0 0.0
      %635 = vmatpush.msra.mxu0 0.0
      %636 = vmatpush.msra.mxu0 0.0
      %637 = vmatpush.msra.mxu0 0.0
      %638 = vmatpush.msra.mxu0 0.0
      %639 = vmatpush.msra.mxu0 0.0
      %640 = vmatpush.msra.mxu0 0.0
      %641 = vmatpush.msra.mxu0 %v601
      %642 = vmatpush.msra.mxu0 %v600
      %643 = vmatmul.f32.gmra.mxu0 %v604
      %v644 = vpop.f32.mrf.mxu0
      %v645 = vadd.f32 0.0, %v644
      %646 = vmatmul.f32.gmra.mxu0 %v607
      %v647 = vpop.f32.mrf.mxu0
      %v648 = vadd.f32 0.0, %v647
      %649 = vmatmul.f32.gmra.mxu0 %v610
      %v650 = vpop.f32.mrf.mxu0
      %v651 = vadd.f32 0.0, %v650
      %652 = vmatmul.f32.gmra.mxu0 %v613
      %v653 = vpop.f32.mrf.mxu0
      %v654 = vadd.f32 0.0, %v653
      %655 = vmatmul.f32.gmra.mxu0 %v616
      %v656 = vpop.f32.mrf.mxu0
      %v657 = vadd.f32 0.0, %v656
      %658 = vmatmul.f32.gmra.mxu0 %v619
      %v659 = vpop.f32.mrf.mxu0
      %v660 = vadd.f32 0.0, %v659
      %661 = vmatmul.f32.gmra.mxu0 %v622
      %v662 = vpop.f32.mrf.mxu0
      %v663 = vadd.f32 0.0, %v662
      %664 = vmatmul.f32.gmra.mxu0 %v625
      %v665 = vpop.f32.mrf.mxu0
      %v666 = vadd.f32 0.0, %v665
      %667 = vdwg.mxu0
      %s668 = smul.u32 %s20, 64
      %v669 = vlaneseq
      %v670 = vshrl.u32 %v669, 7
      %v671 = vadd.s32 %v670, 8
      %v672 = vadd.s32 %v670, 16
      %v673 = vadd.s32 %v670, 24
      %v674 = vadd.s32 %v670, 32
      %v675 = vadd.s32 %v670, 40
      %v676 = vadd.s32 %v670, 48
      %v677 = vadd.s32 %v670, 56
      %v678 = vstv %s668
      %v679 = vadd.s32 %v678, %v670
      %v680 = vadd.s32 %v678, %v671
      %v681 = vadd.s32 %v678, %v672
      %v682 = vadd.s32 %v678, %v673
      %v683 = vadd.s32 %v678, %v674
      %v684 = vadd.s32 %v678, %v675
      %v685 = vadd.s32 %v678, %v676
      %v686 = vadd.s32 %v678, %v677
      %v687 = vlaneseq
      %v688 = vand.u32 %v687, 127
      %v689 = vsub.s32 %v688, %v679
      %v690 = vsub.s32 %v688, %v680
      %v691 = vsub.s32 %v688, %v681
      %v692 = vsub.s32 %v688, %v682
      %v693 = vsub.s32 %v688, %v683
      %v694 = vsub.s32 %v688, %v684
      %v695 = vsub.s32 %v688, %v685
      %v696 = vsub.s32 %v688, %v686
      %v697 = vadd.s32 %v689, 4
      %v698 = vadd.s32 %v690, 4
      %v699 = vadd.s32 %v691, 4
      %v700 = vadd.s32 %v692, 4
      %v701 = vadd.s32 %v693, 4
      %v702 = vadd.s32 %v694, 4
      %v703 = vadd.s32 %v695, 4
      %v704 = vadd.s32 %v696, 4
      %vm705 = vcmp.gt.s32.totalorder %v697, 0
      %v706 = vsel %vm705, %v697, 0
      %vm707 = vcmp.gt.s32.totalorder %v698, 0
      %v708 = vsel %vm707, %v698, 0
      %vm709 = vcmp.gt.s32.totalorder %v699, 0
      %v710 = vsel %vm709, %v699, 0
      %vm711 = vcmp.gt.s32.totalorder %v700, 0
      %v712 = vsel %vm711, %v700, 0
      %vm713 = vcmp.gt.s32.totalorder %v701, 0
      %v714 = vsel %vm713, %v701, 0
      %vm715 = vcmp.gt.s32.totalorder %v702, 0
      %v716 = vsel %vm715, %v702, 0
      %vm717 = vcmp.gt.s32.totalorder %v703, 0
      %v718 = vsel %vm717, %v703, 0
      %vm719 = vcmp.gt.s32.totalorder %v704, 0
      %v720 = vsel %vm719, %v704, 0
      %vm721 = vcmp.lt.s32.totalorder %v706, 8
      %v722 = vsel %vm721, %v706, 8
      %vm723 = vcmp.lt.s32.totalorder %v708, 8
      %v724 = vsel %vm723, %v708, 8
      %vm725 = vcmp.lt.s32.totalorder %v710, 8
      %v726 = vsel %vm725, %v710, 8
      %vm727 = vcmp.lt.s32.totalorder %v712, 8
      %v728 = vsel %vm727, %v712, 8
      %vm729 = vcmp.lt.s32.totalorder %v714, 8
      %v730 = vsel %vm729, %v714, 8
      %vm731 = vcmp.lt.s32.totalorder %v716, 8
      %v732 = vsel %vm731, %v716, 8
      %vm733 = vcmp.lt.s32.totalorder %v718, 8
      %v734 = vsel %vm733, %v718, 8
      %vm735 = vcmp.lt.s32.totalorder %v720, 8
      %v736 = vsel %vm735, %v720, 8
      %vm737 = vcmp.eq.s32.totalorder %v722, 0
      %vm738 = vcmp.eq.s32.totalorder %v724, 0
      %vm739 = vcmp.eq.s32.totalorder %v726, 0
      %vm740 = vcmp.eq.s32.totalorder %v728, 0
      %vm741 = vcmp.eq.s32.totalorder %v730, 0
      %vm742 = vcmp.eq.s32.totalorder %v732, 0
      %vm743 = vcmp.eq.s32.totalorder %v734, 0
      %vm744 = vcmp.eq.s32.totalorder %v736, 0
      %746 = vset.pattern.permute.xlu0 0
      %747 = vperm.xlu0 %746, %v645
      %v748 = vpop.permute.xlu0 %747
      %751 = vset.pattern.permute.xlu0 0
      %752 = vperm.xlu0 %751, %v648
      %v753 = vpop.permute.xlu0 %752
      %756 = vset.pattern.permute.xlu0 0
      %757 = vperm.xlu0 %756, %v651
      %v758 = vpop.permute.xlu0 %757
      %761 = vset.pattern.permute.xlu0 0
      %762 = vperm.xlu0 %761, %v654
      %v763 = vpop.permute.xlu0 %762
      %766 = vset.pattern.permute.xlu0 0
      %767 = vperm.xlu0 %766, %v657
      %v768 = vpop.permute.xlu0 %767
      %771 = vset.pattern.permute.xlu0 0
      %772 = vperm.xlu0 %771, %v660
      %v773 = vpop.permute.xlu0 %772
      %776 = vset.pattern.permute.xlu0 0
      %777 = vperm.xlu0 %776, %v663
      %v778 = vpop.permute.xlu0 %777
      %781 = vset.pattern.permute.xlu0 0
      %782 = vperm.xlu0 %781, %v666
      %v783 = vpop.permute.xlu0 %782
      %v785 = vsel %vm737, %v748, 0.0
      %v786 = vsel %vm738, %v753, 0.0
      %v787 = vsel %vm739, %v758, 0.0
      %v788 = vsel %vm740, %v763, 0.0
      %v789 = vsel %vm741, %v768, 0.0
      %v790 = vsel %vm742, %v773, 0.0
      %v791 = vsel %vm743, %v778, 0.0
      %v792 = vsel %vm744, %v783, 0.0
      %vm793 = vcmp.eq.s32.totalorder %v722, 1
      %vm794 = vcmp.eq.s32.totalorder %v724, 1
      %vm795 = vcmp.eq.s32.totalorder %v726, 1
      %vm796 = vcmp.eq.s32.totalorder %v728, 1
      %vm797 = vcmp.eq.s32.totalorder %v730, 1
      %vm798 = vcmp.eq.s32.totalorder %v732, 1
      %vm799 = vcmp.eq.s32.totalorder %v734, 1
      %vm800 = vcmp.eq.s32.totalorder %v736, 1
      %801 = vset.pattern.permute.xlu0 1
      %802 = vperm.xlu0 %801, %v645
      %v803 = vpop.permute.xlu0 %802
      %805 = vset.pattern.permute.xlu0 1
      %806 = vperm.xlu0 %805, %v648
      %v807 = vpop.permute.xlu0 %806
      %809 = vset.pattern.permute.xlu0 1
      %810 = vperm.xlu0 %809, %v651
      %v811 = vpop.permute.xlu0 %810
      %813 = vset.pattern.permute.xlu0 1
      %814 = vperm.xlu0 %813, %v654
      %v815 = vpop.permute.xlu0 %814
      %817 = vset.pattern.permute.xlu0 1
      %818 = vperm.xlu0 %817, %v657
      %v819 = vpop.permute.xlu0 %818
      %821 = vset.pattern.permute.xlu0 1
      %822 = vperm.xlu0 %821, %v660
      %v823 = vpop.permute.xlu0 %822
      %825 = vset.pattern.permute.xlu0 1
      %826 = vperm.xlu0 %825, %v663
      %v827 = vpop.permute.xlu0 %826
      %829 = vset.pattern.permute.xlu0 1
      %830 = vperm.xlu0 %829, %v666
      %v831 = vpop.permute.xlu0 %830
      %v833 = vsel %vm793, %v803, %v785
      %v834 = vsel %vm794, %v807, %v786
      %v835 = vsel %vm795, %v811, %v787
      %v836 = vsel %vm796, %v815, %v788
      %v837 = vsel %vm797, %v819, %v789
      %v838 = vsel %vm798, %v823, %v790
      %v839 = vsel %vm799, %v827, %v791
      %v840 = vsel %vm800, %v831, %v792
      %vm841 = vcmp.eq.s32.totalorder %v722, 2
      %vm842 = vcmp.eq.s32.totalorder %v724, 2
      %vm843 = vcmp.eq.s32.totalorder %v726, 2
      %vm844 = vcmp.eq.s32.totalorder %v728, 2
      %vm845 = vcmp.eq.s32.totalorder %v730, 2
      %vm846 = vcmp.eq.s32.totalorder %v732, 2
      %vm847 = vcmp.eq.s32.totalorder %v734, 2
      %vm848 = vcmp.eq.s32.totalorder %v736, 2
      %849 = vset.pattern.permute.xlu0 2
      %850 = vperm.xlu0 %849, %v645
      %v851 = vpop.permute.xlu0 %850
      %853 = vset.pattern.permute.xlu0 2
      %854 = vperm.xlu0 %853, %v648
      %v855 = vpop.permute.xlu0 %854
      %857 = vset.pattern.permute.xlu0 2
      %858 = vperm.xlu0 %857, %v651
      %v859 = vpop.permute.xlu0 %858
      %861 = vset.pattern.permute.xlu0 2
      %862 = vperm.xlu0 %861, %v654
      %v863 = vpop.permute.xlu0 %862
      %865 = vset.pattern.permute.xlu0 2
      %866 = vperm.xlu0 %865, %v657
      %v867 = vpop.permute.xlu0 %866
      %869 = vset.pattern.permute.xlu0 2
      %870 = vperm.xlu0 %869, %v660
      %v871 = vpop.permute.xlu0 %870
      %873 = vset.pattern.permute.xlu0 2
      %874 = vperm.xlu0 %873, %v663
      %v875 = vpop.permute.xlu0 %874
      %877 = vset.pattern.permute.xlu0 2
      %878 = vperm.xlu0 %877, %v666
      %v879 = vpop.permute.xlu0 %878
      %v881 = vsel %vm841, %v851, %v833
      %v882 = vsel %vm842, %v855, %v834
      %v883 = vsel %vm843, %v859, %v835
      %v884 = vsel %vm844, %v863, %v836
      %v885 = vsel %vm845, %v867, %v837
      %v886 = vsel %vm846, %v871, %v838
      %v887 = vsel %vm847, %v875, %v839
      %v888 = vsel %vm848, %v879, %v840
      %vm889 = vcmp.eq.s32.totalorder %v722, 3
      %vm890 = vcmp.eq.s32.totalorder %v724, 3
      %vm891 = vcmp.eq.s32.totalorder %v726, 3
      %vm892 = vcmp.eq.s32.totalorder %v728, 3
      %vm893 = vcmp.eq.s32.totalorder %v730, 3
      %vm894 = vcmp.eq.s32.totalorder %v732, 3
      %vm895 = vcmp.eq.s32.totalorder %v734, 3
      %vm896 = vcmp.eq.s32.totalorder %v736, 3
      %897 = vset.pattern.permute.xlu0 3
      %898 = vperm.xlu0 %897, %v645
      %v899 = vpop.permute.xlu0 %898
      %901 = vset.pattern.permute.xlu0 3
      %902 = vperm.xlu0 %901, %v648
      %v903 = vpop.permute.xlu0 %902
      %905 = vset.pattern.permute.xlu0 3
      %906 = vperm.xlu0 %905, %v651
      %v907 = vpop.permute.xlu0 %906
      %909 = vset.pattern.permute.xlu0 3
      %910 = vperm.xlu0 %909, %v654
      %v911 = vpop.permute.xlu0 %910
      %913 = vset.pattern.permute.xlu0 3
      %914 = vperm.xlu0 %913, %v657
      %v915 = vpop.permute.xlu0 %914
      %917 = vset.pattern.permute.xlu0 3
      %918 = vperm.xlu0 %917, %v660
      %v919 = vpop.permute.xlu0 %918
      %921 = vset.pattern.permute.xlu0 3
      %922 = vperm.xlu0 %921, %v663
      %v923 = vpop.permute.xlu0 %922
      %925 = vset.pattern.permute.xlu0 3
      %926 = vperm.xlu0 %925, %v666
      %v927 = vpop.permute.xlu0 %926
      %v929 = vsel %vm889, %v899, %v881
      %v930 = vsel %vm890, %v903, %v882
      %v931 = vsel %vm891, %v907, %v883
      %v932 = vsel %vm892, %v911, %v884
      %v933 = vsel %vm893, %v915, %v885
      %v934 = vsel %vm894, %v919, %v886
      %v935 = vsel %vm895, %v923, %v887
      %v936 = vsel %vm896, %v927, %v888
      %vm937 = vcmp.eq.s32.totalorder %v722, 4
      %vm938 = vcmp.eq.s32.totalorder %v724, 4
      %vm939 = vcmp.eq.s32.totalorder %v726, 4
      %vm940 = vcmp.eq.s32.totalorder %v728, 4
      %vm941 = vcmp.eq.s32.totalorder %v730, 4
      %vm942 = vcmp.eq.s32.totalorder %v732, 4
      %vm943 = vcmp.eq.s32.totalorder %v734, 4
      %vm944 = vcmp.eq.s32.totalorder %v736, 4
      %945 = vset.pattern.permute.xlu0 4
      %946 = vperm.xlu0 %945, %v645
      %v947 = vpop.permute.xlu0 %946
      %949 = vset.pattern.permute.xlu0 4
      %950 = vperm.xlu0 %949, %v648
      %v951 = vpop.permute.xlu0 %950
      %953 = vset.pattern.permute.xlu0 4
      %954 = vperm.xlu0 %953, %v651
      %v955 = vpop.permute.xlu0 %954
      %957 = vset.pattern.permute.xlu0 4
      %958 = vperm.xlu0 %957, %v654
      %v959 = vpop.permute.xlu0 %958
      %961 = vset.pattern.permute.xlu0 4
      %962 = vperm.xlu0 %961, %v657
      %v963 = vpop.permute.xlu0 %962
      %965 = vset.pattern.permute.xlu0 4
      %966 = vperm.xlu0 %965, %v660
      %v967 = vpop.permute.xlu0 %966
      %969 = vset.pattern.permute.xlu0 4
      %970 = vperm.xlu0 %969, %v663
      %v971 = vpop.permute.xlu0 %970
      %973 = vset.pattern.permute.xlu0 4
      %974 = vperm.xlu0 %973, %v666
      %v975 = vpop.permute.xlu0 %974
      %v977 = vsel %vm937, %v947, %v929
      %v978 = vsel %vm938, %v951, %v930
      %v979 = vsel %vm939, %v955, %v931
      %v980 = vsel %vm940, %v959, %v932
      %v981 = vsel %vm941, %v963, %v933
      %v982 = vsel %vm942, %v967, %v934
      %v983 = vsel %vm943, %v971, %v935
      %v984 = vsel %vm944, %v975, %v936
      %vm985 = vcmp.eq.s32.totalorder %v722, 5
      %vm986 = vcmp.eq.s32.totalorder %v724, 5
      %vm987 = vcmp.eq.s32.totalorder %v726, 5
      %vm988 = vcmp.eq.s32.totalorder %v728, 5
      %vm989 = vcmp.eq.s32.totalorder %v730, 5
      %vm990 = vcmp.eq.s32.totalorder %v732, 5
      %vm991 = vcmp.eq.s32.totalorder %v734, 5
      %vm992 = vcmp.eq.s32.totalorder %v736, 5
      %993 = vset.pattern.permute.xlu0 5
      %994 = vperm.xlu0 %993, %v645
      %v995 = vpop.permute.xlu0 %994
      %997 = vset.pattern.permute.xlu0 5
      %998 = vperm.xlu0 %997, %v648
      %v999 = vpop.permute.xlu0 %998
      %1001 = vset.pattern.permute.xlu0 5
      %1002 = vperm.xlu0 %1001, %v651
      %v1003 = vpop.permute.xlu0 %1002
      %1005 = vset.pattern.permute.xlu0 5
      %1006 = vperm.xlu0 %1005, %v654
      %v1007 = vpop.permute.xlu0 %1006
      %1009 = vset.pattern.permute.xlu0 5
      %1010 = vperm.xlu0 %1009, %v657
      %v1011 = vpop.permute.xlu0 %1010
      %1013 = vset.pattern.permute.xlu0 5
      %1014 = vperm.xlu0 %1013, %v660
      %v1015 = vpop.permute.xlu0 %1014
      %1017 = vset.pattern.permute.xlu0 5
      %1018 = vperm.xlu0 %1017, %v663
      %v1019 = vpop.permute.xlu0 %1018
      %1021 = vset.pattern.permute.xlu0 5
      %1022 = vperm.xlu0 %1021, %v666
      %v1023 = vpop.permute.xlu0 %1022
      %v1025 = vsel %vm985, %v995, %v977
      %v1026 = vsel %vm986, %v999, %v978
      %v1027 = vsel %vm987, %v1003, %v979
      %v1028 = vsel %vm988, %v1007, %v980
      %v1029 = vsel %vm989, %v1011, %v981
      %v1030 = vsel %vm990, %v1015, %v982
      %v1031 = vsel %vm991, %v1019, %v983
      %v1032 = vsel %vm992, %v1023, %v984
      %vm1033 = vcmp.eq.s32.totalorder %v722, 6
      %vm1034 = vcmp.eq.s32.totalorder %v724, 6
      %vm1035 = vcmp.eq.s32.totalorder %v726, 6
      %vm1036 = vcmp.eq.s32.totalorder %v728, 6
      %vm1037 = vcmp.eq.s32.totalorder %v730, 6
      %vm1038 = vcmp.eq.s32.totalorder %v732, 6
      %vm1039 = vcmp.eq.s32.totalorder %v734, 6
      %vm1040 = vcmp.eq.s32.totalorder %v736, 6
      %1041 = vset.pattern.permute.xlu0 6
      %1042 = vperm.xlu0 %1041, %v645
      %v1043 = vpop.permute.xlu0 %1042
      %1045 = vset.pattern.permute.xlu0 6
      %1046 = vperm.xlu0 %1045, %v648
      %v1047 = vpop.permute.xlu0 %1046
      %1049 = vset.pattern.permute.xlu0 6
      %1050 = vperm.xlu0 %1049, %v651
      %v1051 = vpop.permute.xlu0 %1050
      %1053 = vset.pattern.permute.xlu0 6
      %1054 = vperm.xlu0 %1053, %v654
      %v1055 = vpop.permute.xlu0 %1054
      %1057 = vset.pattern.permute.xlu0 6
      %1058 = vperm.xlu0 %1057, %v657
      %v1059 = vpop.permute.xlu0 %1058
      %1061 = vset.pattern.permute.xlu0 6
      %1062 = vperm.xlu0 %1061, %v660
      %v1063 = vpop.permute.xlu0 %1062
      %1065 = vset.pattern.permute.xlu0 6
      %1066 = vperm.xlu0 %1065, %v663
      %v1067 = vpop.permute.xlu0 %1066
      %1069 = vset.pattern.permute.xlu0 6
      %1070 = vperm.xlu0 %1069, %v666
      %v1071 = vpop.permute.xlu0 %1070
      %v1073 = vsel %vm1033, %v1043, %v1025
      %v1074 = vsel %vm1034, %v1047, %v1026
      %v1075 = vsel %vm1035, %v1051, %v1027
      %v1076 = vsel %vm1036, %v1055, %v1028
      %v1077 = vsel %vm1037, %v1059, %v1029
      %v1078 = vsel %vm1038, %v1063, %v1030
      %v1079 = vsel %vm1039, %v1067, %v1031
      %v1080 = vsel %vm1040, %v1071, %v1032
      %vm1081 = vcmp.eq.s32.totalorder %v722, 7
      %vm1082 = vcmp.eq.s32.totalorder %v724, 7
      %vm1083 = vcmp.eq.s32.totalorder %v726, 7
      %vm1084 = vcmp.eq.s32.totalorder %v728, 7
      %vm1085 = vcmp.eq.s32.totalorder %v730, 7
      %vm1086 = vcmp.eq.s32.totalorder %v732, 7
      %vm1087 = vcmp.eq.s32.totalorder %v734, 7
      %vm1088 = vcmp.eq.s32.totalorder %v736, 7
      %1089 = vset.pattern.permute.xlu0 7
      %1090 = vperm.xlu0 %1089, %v645
      %v1091 = vpop.permute.xlu0 %1090
      %1093 = vset.pattern.permute.xlu0 7
      %1094 = vperm.xlu0 %1093, %v648
      %v1095 = vpop.permute.xlu0 %1094
      %1097 = vset.pattern.permute.xlu0 7
      %1098 = vperm.xlu0 %1097, %v651
      %v1099 = vpop.permute.xlu0 %1098
      %1101 = vset.pattern.permute.xlu0 7
      %1102 = vperm.xlu0 %1101, %v654
      %v1103 = vpop.permute.xlu0 %1102
      %1105 = vset.pattern.permute.xlu0 7
      %1106 = vperm.xlu0 %1105, %v657
      %v1107 = vpop.permute.xlu0 %1106
      %1109 = vset.pattern.permute.xlu0 7
      %1110 = vperm.xlu0 %1109, %v660
      %v1111 = vpop.permute.xlu0 %1110
      %1113 = vset.pattern.permute.xlu0 7
      %1114 = vperm.xlu0 %1113, %v663
      %v1115 = vpop.permute.xlu0 %1114
      %1117 = vset.pattern.permute.xlu0 7
      %1118 = vperm.xlu0 %1117, %v666
      %v1119 = vpop.permute.xlu0 %1118
      %v1121 = vsel %vm1081, %v1091, %v1073
      %v1122 = vsel %vm1082, %v1095, %v1074
      %v1123 = vsel %vm1083, %v1099, %v1075
      %v1124 = vsel %vm1084, %v1103, %v1076
      %v1125 = vsel %vm1085, %v1107, %v1077
      %v1126 = vsel %vm1086, %v1111, %v1078
      %v1127 = vsel %vm1087, %v1115, %v1079
      %v1128 = vsel %vm1088, %v1119, %v1080
      %vm1129 = vcmp.eq.s32.totalorder %v722, 8
      %vm1130 = vcmp.eq.s32.totalorder %v724, 8
      %vm1131 = vcmp.eq.s32.totalorder %v726, 8
      %vm1132 = vcmp.eq.s32.totalorder %v728, 8
      %vm1133 = vcmp.eq.s32.totalorder %v730, 8
      %vm1134 = vcmp.eq.s32.totalorder %v732, 8
      %vm1135 = vcmp.eq.s32.totalorder %v734, 8
      %vm1136 = vcmp.eq.s32.totalorder %v736, 8
      %1137 = vset.pattern.permute.xlu0 8
      %1138 = vperm.xlu0 %1137, %v645
      %v1139 = vpop.permute.xlu0 %1138
      %1141 = vset.pattern.permute.xlu0 8
      %1142 = vperm.xlu0 %1141, %v648
      %v1143 = vpop.permute.xlu0 %1142
      %1145 = vset.pattern.permute.xlu0 8
      %1146 = vperm.xlu0 %1145, %v651
      %v1147 = vpop.permute.xlu0 %1146
      %1149 = vset.pattern.permute.xlu0 8
      %1150 = vperm.xlu0 %1149, %v654
      %v1151 = vpop.permute.xlu0 %1150
      %1153 = vset.pattern.permute.xlu0 8
      %1154 = vperm.xlu0 %1153, %v657
      %v1155 = vpop.permute.xlu0 %1154
      %1157 = vset.pattern.permute.xlu0 8
      %1158 = vperm.xlu0 %1157, %v660
      %v1159 = vpop.permute.xlu0 %1158
      %1161 = vset.pattern.permute.xlu0 8
      %1162 = vperm.xlu0 %1161, %v663
      %v1163 = vpop.permute.xlu0 %1162
      %1165 = vset.pattern.permute.xlu0 8
      %1166 = vperm.xlu0 %1165, %v666
      %v1167 = vpop.permute.xlu0 %1166
      %v1169 = vsel %vm1129, %v1139, %v1121
      %v1170 = vsel %vm1130, %v1143, %v1122
      %v1171 = vsel %vm1131, %v1147, %v1123
      %v1172 = vsel %vm1132, %v1151, %v1124
      %v1173 = vsel %vm1133, %v1155, %v1125
      %v1174 = vsel %vm1134, %v1159, %v1126
      %v1175 = vsel %vm1135, %v1163, %v1127
      %v1176 = vsel %vm1136, %v1167, %v1128
      %v1178 = vsel %vm602, %v483, 0
      %v1181 = vsel %vm602, %v486, 0
      %v1184 = vsel %vm602, %v489, 0
      %v1187 = vsel %vm602, %v492, 0
      %v1190 = vsel %vm602, %v495, 0
      %v1193 = vsel %vm602, %v498, 0
      %v1196 = vsel %vm602, %v501, 0
      %v1199 = vsel %vm602, %v504, 0
      %v1202 = vsel %vm602, %v507, 0
      %v1205 = vsel %vm602, %v510, 0
      %v1208 = vsel %vm602, %v513, 0
      %v1211 = vsel %vm602, %v516, 0
      %v1214 = vsel %vm602, %v519, 0
      %v1217 = vsel %vm602, %v522, 0
      %v1220 = vsel %vm602, %v525, 0
      %1222 = vmatpush.xpose.msra.mxu0 0.0
      %1223 = vmatpush.xpose.msra.mxu0 %v1220
      %1224 = vmatpush.xpose.msra.mxu0 %v1217
      %1225 = vmatpush.xpose.msra.mxu0 %v1214
      %1226 = vmatpush.xpose.msra.mxu0 %v1211
      %1227 = vmatpush.xpose.msra.mxu0 %v1208
      %1228 = vmatpush.xpose.msra.mxu0 %v1205
      %1229 = vmatpush.xpose.msra.mxu0 %v1202
      %1230 = vmatpush.xpose.msra.mxu0 %v1199
      %1231 = vmatpush.xpose.msra.mxu0 %v1196
      %1232 = vmatpush.xpose.msra.mxu0 %v1193
      %1233 = vmatpush.xpose.msra.mxu0 %v1190
      %1234 = vmatpush.xpose.msra.mxu0 %v1187
      %1235 = vmatpush.xpose.msra.mxu0 %v1184
      %1236 = vmatpush.xpose.msra.mxu0 %v1181
      %1237 = vmatpush.xpose.msra.mxu0 %v1178
      %1238 = vmatmul.f32.gmra.mxu0 %v604
      %v1239 = vpop.f32.mrf.mxu0
      %v1240 = vadd.f32 %v1169, %v1239
      %1241 = vmatmul.f32.gmra.mxu0 %v607
      %v1242 = vpop.f32.mrf.mxu0
      %v1243 = vadd.f32 %v1170, %v1242
      %1244 = vmatmul.f32.gmra.mxu0 %v610
      %v1245 = vpop.f32.mrf.mxu0
      %v1246 = vadd.f32 %v1171, %v1245
      %1247 = vmatmul.f32.gmra.mxu0 %v613
      %v1248 = vpop.f32.mrf.mxu0
      %v1249 = vadd.f32 %v1172, %v1248
      %1250 = vmatmul.f32.gmra.mxu0 %v616
      %v1251 = vpop.f32.mrf.mxu0
      %v1252 = vadd.f32 %v1173, %v1251
      %1253 = vmatmul.f32.gmra.mxu0 %v619
      %v1254 = vpop.f32.mrf.mxu0
      %v1255 = vadd.f32 %v1174, %v1254
      %1256 = vmatmul.f32.gmra.mxu0 %v622
      %v1257 = vpop.f32.mrf.mxu0
      %v1258 = vadd.f32 %v1175, %v1257
      %1259 = vmatmul.f32.gmra.mxu0 %v625
      %v1260 = vpop.f32.mrf.mxu0
      %v1261 = vadd.f32 %v1176, %v1260
      %1262 = vdwg.mxu0
      %vm1263 = vcmask 982016
      %v1264 = vsel %vm1263, %v1240, -inf
      %1265 = vmax.xlane.f32.xlu0 %v1264
      %v1266 = vpop.xlane.xlu0 %1265
      %v1267 = vsel %vm1263, %v1243, -inf
      %1268 = vmax.xlane.f32.xlu0 %v1267
      %v1269 = vpop.xlane.xlu0 %1268
      %v1270 = vsel %vm1263, %v1246, -inf
      %1271 = vmax.xlane.f32.xlu0 %v1270
      %v1272 = vpop.xlane.xlu0 %1271
      %v1273 = vsel %vm1263, %v1249, -inf
      %1274 = vmax.xlane.f32.xlu0 %v1273
      %v1275 = vpop.xlane.xlu0 %1274
      %v1276 = vsel %vm1263, %v1252, -inf
      %1277 = vmax.xlane.f32.xlu0 %v1276
      %v1278 = vpop.xlane.xlu0 %1277
      %v1279 = vsel %vm1263, %v1255, -inf
      %1280 = vmax.xlane.f32.xlu0 %v1279
      %v1281 = vpop.xlane.xlu0 %1280
      %v1282 = vsel %vm1263, %v1258, -inf
      %1283 = vmax.xlane.f32.xlu0 %v1282
      %v1284 = vpop.xlane.xlu0 %1283
      %v1285 = vsel %vm1263, %v1261, -inf
      %1286 = vmax.xlane.f32.xlu0 %v1285
      %v1287 = vpop.xlane.xlu0 %1286
      %v1288 = vsub.f32 %v1240, %v1266
      %v1289 = vsub.f32 %v1243, %v1269
      %v1290 = vsub.f32 %v1246, %v1272
      %v1291 = vsub.f32 %v1249, %v1275
      %v1292 = vsub.f32 %v1252, %v1278
      %v1293 = vsub.f32 %v1255, %v1281
      %v1294 = vsub.f32 %v1258, %v1284
      %v1295 = vsub.f32 %v1261, %v1287
      %v1296 = vmul.f32 %v1288, 1.442695
      %v1297 = vpow.pop %v1296
      %v1298 = vmul.f32 %v1289, 1.442695
      %v1299 = vpow.pop %v1298
      %v1300 = vmul.f32 %v1290, 1.442695
      %v1301 = vpow.pop %v1300
      %v1302 = vmul.f32 %v1291, 1.442695
      %v1303 = vpow.pop %v1302
      %v1304 = vmul.f32 %v1292, 1.442695
      %v1305 = vpow.pop %v1304
      %v1306 = vmul.f32 %v1293, 1.442695
      %v1307 = vpow.pop %v1306
      %v1308 = vmul.f32 %v1294, 1.442695
      %v1309 = vpow.pop %v1308
      %v1310 = vmul.f32 %v1295, 1.442695
      %v1311 = vpow.pop %v1310
      %v1312 = vsel %vm1263, %v1297, 0.0
      %1313 = vadd.xlane.f32.xlu0 %v1312
      %v1314 = vpop.xlane.xlu0 %1313
      %v1315 = vsel %vm1263, %v1299, 0.0
      %1316 = vadd.xlane.f32.xlu0 %v1315
      %v1317 = vpop.xlane.xlu0 %1316
      %v1318 = vsel %vm1263, %v1301, 0.0
      %1319 = vadd.xlane.f32.xlu0 %v1318
      %v1320 = vpop.xlane.xlu0 %1319
      %v1321 = vsel %vm1263, %v1303, 0.0
      %1322 = vadd.xlane.f32.xlu0 %v1321
      %v1323 = vpop.xlane.xlu0 %1322
      %v1324 = vsel %vm1263, %v1305, 0.0
      %1325 = vadd.xlane.f32.xlu0 %v1324
      %v1326 = vpop.xlane.xlu0 %1325
      %v1327 = vsel %vm1263, %v1307, 0.0
      %1328 = vadd.xlane.f32.xlu0 %v1327
      %v1329 = vpop.xlane.xlu0 %1328
      %v1330 = vsel %vm1263, %v1309, 0.0
      %1331 = vadd.xlane.f32.xlu0 %v1330
      %v1332 = vpop.xlane.xlu0 %1331
      %v1333 = vsel %vm1263, %v1311, 0.0
      %1334 = vadd.xlane.f32.xlu0 %v1333
      %v1335 = vpop.xlane.xlu0 %1334
      %v1336 = vrcp.pop %v1314
      %v1337 = vmul.f32 %v1314, %v1336
      %v1338 = vsub.f32 1.0, %v1337
      %v1339 = vmul.f32 %v1336, %v1338
      %v1340 = vadd.f32 %v1336, %v1339
      %vm1341 = vweird.f32 %v1314
      %vm1342 = vweird.f32 %v1336
      %vm1343 = vmor %vm1341, %vm1342
      %v1344 = vsel %vm1343, %v1336, %v1340
      %v1345 = vand.u32 2147483647, %v1314
      %vm1346 = vcmp.eq.f32.partialorder %v1345, 8.507059e+37
      %v1347 = vand.u32 %v1314, 2147483648
      %v1348 = vor.u32 1.1754944e-38, %v1347
      %v1349 = vsel %vm1346, %v1348, %v1344
      %v1350 = vrcp.pop %v1317
      %v1351 = vmul.f32 %v1317, %v1350
      %v1352 = vsub.f32 1.0, %v1351
      %v1353 = vmul.f32 %v1350, %v1352
      %v1354 = vadd.f32 %v1350, %v1353
      %vm1355 = vweird.f32 %v1317
      %vm1356 = vweird.f32 %v1350
      %vm1357 = vmor %vm1355, %vm1356
      %v1358 = vsel %vm1357, %v1350, %v1354
      %v1359 = vand.u32 2147483647, %v1317
      %vm1360 = vcmp.eq.f32.partialorder %v1359, 8.507059e+37
      %v1361 = vand.u32 %v1317, 2147483648
      %v1362 = vor.u32 1.1754944e-38, %v1361
      %v1363 = vsel %vm1360, %v1362, %v1358
      %v1364 = vrcp.pop %v1320
      %v1365 = vmul.f32 %v1320, %v1364
      %v1366 = vsub.f32 1.0, %v1365
      %v1367 = vmul.f32 %v1364, %v1366
      %v1368 = vadd.f32 %v1364, %v1367
      %vm1369 = vweird.f32 %v1320
      %vm1370 = vweird.f32 %v1364
      %vm1371 = vmor %vm1369, %vm1370
      %v1372 = vsel %vm1371, %v1364, %v1368
      %v1373 = vand.u32 2147483647, %v1320
      %vm1374 = vcmp.eq.f32.partialorder %v1373, 8.507059e+37
      %v1375 = vand.u32 %v1320, 2147483648
      %v1376 = vor.u32 1.1754944e-38, %v1375
      %v1377 = vsel %vm1374, %v1376, %v1372
      %v1378 = vrcp.pop %v1323
      %v1379 = vmul.f32 %v1323, %v1378
      %v1380 = vsub.f32 1.0, %v1379
      %v1381 = vmul.f32 %v1378, %v1380
      %v1382 = vadd.f32 %v1378, %v1381
      %vm1383 = vweird.f32 %v1323
      %vm1384 = vweird.f32 %v1378
      %vm1385 = vmor %vm1383, %vm1384
      %v1386 = vsel %vm1385, %v1378, %v1382
      %v1387 = vand.u32 2147483647, %v1323
      %vm1388 = vcmp.eq.f32.partialorder %v1387, 8.507059e+37
      %v1389 = vand.u32 %v1323, 2147483648
      %v1390 = vor.u32 1.1754944e-38, %v1389
      %v1391 = vsel %vm1388, %v1390, %v1386
      %v1392 = vrcp.pop %v1326
      %v1393 = vmul.f32 %v1326, %v1392
      %v1394 = vsub.f32 1.0, %v1393
      %v1395 = vmul.f32 %v1392, %v1394
      %v1396 = vadd.f32 %v1392, %v1395
      %vm1397 = vweird.f32 %v1326
      %vm1398 = vweird.f32 %v1392
      %vm1399 = vmor %vm1397, %vm1398
      %v1400 = vsel %vm1399, %v1392, %v1396
      %v1401 = vand.u32 2147483647, %v1326
      %vm1402 = vcmp.eq.f32.partialorder %v1401, 8.507059e+37
      %v1403 = vand.u32 %v1326, 2147483648
      %v1404 = vor.u32 1.1754944e-38, %v1403
      %v1405 = vsel %vm1402, %v1404, %v1400
      %v1406 = vrcp.pop %v1329
      %v1407 = vmul.f32 %v1329, %v1406
      %v1408 = vsub.f32 1.0, %v1407
      %v1409 = vmul.f32 %v1406, %v1408
      %v1410 = vadd.f32 %v1406, %v1409
      %vm1411 = vweird.f32 %v1329
      %vm1412 = vweird.f32 %v1406
      %vm1413 = vmor %vm1411, %vm1412
      %v1414 = vsel %vm1413, %v1406, %v1410
      %v1415 = vand.u32 2147483647, %v1329
      %vm1416 = vcmp.eq.f32.partialorder %v1415, 8.507059e+37
      %v1417 = vand.u32 %v1329, 2147483648
      %v1418 = vor.u32 1.1754944e-38, %v1417
      %v1419 = vsel %vm1416, %v1418, %v1414
      %v1420 = vrcp.pop %v1332
      %v1421 = vmul.f32 %v1332, %v1420
      %v1422 = vsub.f32 1.0, %v1421
      %v1423 = vmul.f32 %v1420, %v1422
      %v1424 = vadd.f32 %v1420, %v1423
      %vm1425 = vweird.f32 %v1332
      %vm1426 = vweird.f32 %v1420
      %vm1427 = vmor %vm1425, %vm1426
      %v1428 = vsel %vm1427, %v1420, %v1424
      %v1429 = vand.u32 2147483647, %v1332
      %vm1430 = vcmp.eq.f32.partialorder %v1429, 8.507059e+37
      %v1431 = vand.u32 %v1332, 2147483648
      %v1432 = vor.u32 1.1754944e-38, %v1431
      %v1433 = vsel %vm1430, %v1432, %v1428
      %v1434 = vrcp.pop %v1335
      %v1435 = vmul.f32 %v1335, %v1434
      %v1436 = vsub.f32 1.0, %v1435
      %v1437 = vmul.f32 %v1434, %v1436
      %v1438 = vadd.f32 %v1434, %v1437
      %vm1439 = vweird.f32 %v1335
      %vm1440 = vweird.f32 %v1434
      %vm1441 = vmor %vm1439, %vm1440
      %v1442 = vsel %vm1441, %v1434, %v1438
      %v1443 = vand.u32 2147483647, %v1335
      %vm1444 = vcmp.eq.f32.partialorder %v1443, 8.507059e+37
      %v1445 = vand.u32 %v1335, 2147483648
      %v1446 = vor.u32 1.1754944e-38, %v1445
      %v1447 = vsel %vm1444, %v1446, %v1442
      %v1448 = vmul.f32 %v1297, %v1349
      %v1449 = vmul.f32 %v1299, %v1363
      %v1450 = vmul.f32 %v1301, %v1377
      %v1451 = vmul.f32 %v1303, %v1391
      %v1452 = vmul.f32 %v1305, %v1405
      %v1453 = vmul.f32 %v1307, %v1419
      %v1454 = vmul.f32 %v1309, %v1433
      %v1455 = vmul.f32 %v1311, %v1447
      %1456 = vst.msk [vmem:[%s321] sm:$0xff] %vm1263, %v1448
      %1457 = vst.msk [vmem:[%s321 + $0x8] sm:$0xff] %vm1263, %v1449
      %1458 = vst.msk [vmem:[%s321 + $0x10] sm:$0xff] %vm1263, %v1450
      %1459 = vst.msk [vmem:[%s321 + $0x18] sm:$0xff] %vm1263, %v1451
      %1460 = vst.msk [vmem:[%s321 + $0x20] sm:$0xff] %vm1263, %v1452
      %1461 = vst.msk [vmem:[%s321 + $0x28] sm:$0xff] %vm1263, %v1453
      %1462 = vst.msk [vmem:[%s321 + $0x30] sm:$0xff] %vm1263, %v1454
      %1463 = vst.msk [vmem:[%s321 + $0x38] sm:$0xff] %vm1263, %v1455
      %v1465 = vsel %vm1263, %v1448, 0
      %v1468 = vsel %vm1263, %v1449, 0
      %v1471 = vsel %vm1263, %v1450, 0
      %v1474 = vsel %vm1263, %v1451, 0
      %v1477 = vsel %vm1263, %v1452, 0
      %v1480 = vsel %vm1263, %v1453, 0
      %v1483 = vsel %vm1263, %v1454, 0
      %v1486 = vsel %vm1263, %v1455, 0
      %1488 = vmatpush.msra.mxu0 0.0
      %1489 = vmatpush.msra.mxu0 %v590
      %1490 = vmatpush.msra.mxu0 %v587
      %1491 = vmatpush.msra.mxu0 %v584
      %1492 = vmatpush.msra.mxu0 %v581
      %1493 = vmatpush.msra.mxu0 %v578
      %1494 = vmatpush.msra.mxu0 %v575
      %1495 = vmatpush.msra.mxu0 %v572
      %1496 = vmatpush.msra.mxu0 %v569
      %1497 = vmatpush.msra.mxu0 %v566
      %1498 = vmatpush.msra.mxu0 %v563
      %1499 = vmatpush.msra.mxu0 %v560
      %1500 = vmatpush.msra.mxu0 %v557
      %1501 = vmatpush.msra.mxu0 %v554
      %1502 = vmatpush.msra.mxu0 %v551
      %1503 = vmatpush.msra.mxu0 %v548
      %1504 = vmatmul.f32.gmra.mxu0 %v1465
      %v1505 = vpop.f32.mrf.mxu0
      %v1506 = vadd.f32 0.0, %v1505
      %1507 = vmatmul.f32.gmra.mxu0 %v1468
      %v1508 = vpop.f32.mrf.mxu0
      %v1509 = vadd.f32 0.0, %v1508
      %1510 = vmatmul.f32.gmra.mxu0 %v1471
      %v1511 = vpop.f32.mrf.mxu0
      %v1512 = vadd.f32 0.0, %v1511
      %1513 = vmatmul.f32.gmra.mxu0 %v1474
      %v1514 = vpop.f32.mrf.mxu0
      %v1515 = vadd.f32 0.0, %v1514
      %1516 = vmatmul.f32.gmra.mxu0 %v1477
      %v1517 = vpop.f32.mrf.mxu0
      %v1518 = vadd.f32 0.0, %v1517
      %1519 = vmatmul.f32.gmra.mxu0 %v1480
      %v1520 = vpop.f32.mrf.mxu0
      %v1521 = vadd.f32 0.0, %v1520
      %1522 = vmatmul.f32.gmra.mxu0 %v1483
      %v1523 = vpop.f32.mrf.mxu0
      %v1524 = vadd.f32 0.0, %v1523
      %1525 = vmatmul.f32.gmra.mxu0 %v1486
      %v1526 = vpop.f32.mrf.mxu0
      %v1527 = vadd.f32 0.0, %v1526
      %1528 = vdwg.mxu0
      %v1529 = vld [vmem:[%s5] sm:$0xff]
      %v1530 = vld [vmem:[%s5 + $0x8] sm:$0xff]
      %v1532 = vsel %vm602, %v1506, 0
      %v1535 = vsel %vm602, %v1509, 0
      %v1538 = vsel %vm602, %v1512, 0
      %v1541 = vsel %vm602, %v1515, 0
      %v1544 = vsel %vm602, %v1518, 0
      %v1547 = vsel %vm602, %v1521, 0
      %v1550 = vsel %vm602, %v1524, 0
      %v1553 = vsel %vm602, %v1527, 0
      %1555 = vmatpush.msra.mxu0 0.0
      %1556 = vmatpush.msra.mxu0 0.0
      %1557 = vmatpush.msra.mxu0 0.0
      %1558 = vmatpush.msra.mxu0 0.0
      %1559 = vmatpush.msra.mxu0 0.0
      %1560 = vmatpush.msra.mxu0 0.0
      %1561 = vmatpush.msra.mxu0 0.0
      %1562 = vmatpush.msra.mxu0 0.0
      %1563 = vmatpush.msra.mxu0 0.0
      %1564 = vmatpush.msra.mxu0 0.0
      %1565 = vmatpush.msra.mxu0 0.0
      %1566 = vmatpush.msra.mxu0 0.0
      %1567 = vmatpush.msra.mxu0 0.0
      %1568 = vmatpush.msra.mxu0 0.0
      %1569 = vmatpush.msra.mxu0 %v1530
      %1570 = vmatpush.msra.mxu0 %v1529
      %1571 = vmatmul.f32.gmra.mxu0 %v1532
      %v1572 = vpop.f32.mrf.mxu0
      %v1573 = vadd.f32 0.0, %v1572
      %1574 = vmatmul.f32.gmra.mxu0 %v1535
      %v1575 = vpop.f32.mrf.mxu0
      %v1576 = vadd.f32 0.0, %v1575
      %1577 = vmatmul.f32.gmra.mxu0 %v1538
      %v1578 = vpop.f32.mrf.mxu0
      %v1579 = vadd.f32 0.0, %v1578
      %1580 = vmatmul.f32.gmra.mxu0 %v1541
      %v1581 = vpop.f32.mrf.mxu0
      %v1582 = vadd.f32 0.0, %v1581
      %1583 = vmatmul.f32.gmra.mxu0 %v1544
      %v1584 = vpop.f32.mrf.mxu0
      %v1585 = vadd.f32 0.0, %v1584
      %1586 = vmatmul.f32.gmra.mxu0 %v1547
      %v1587 = vpop.f32.mrf.mxu0
      %v1588 = vadd.f32 0.0, %v1587
      %1589 = vmatmul.f32.gmra.mxu0 %v1550
      %v1590 = vpop.f32.mrf.mxu0
      %v1591 = vadd.f32 0.0, %v1590
      %1592 = vmatmul.f32.gmra.mxu0 %v1553
      %v1593 = vpop.f32.mrf.mxu0
      %v1594 = vadd.f32 0.0, %v1593
      %1595 = vdwg.mxu0
      %1596 = vst.msk [vmem:[%s315] sm:$0xff] %vm602, %v1573
      %1597 = vst.msk [vmem:[%s315 + $0x8] sm:$0xff] %vm602, %v1576
      %1598 = vst.msk [vmem:[%s315 + $0x10] sm:$0xff] %vm602, %v1579
      %1599 = vst.msk [vmem:[%s315 + $0x18] sm:$0xff] %vm602, %v1582
      %1600 = vst.msk [vmem:[%s315 + $0x20] sm:$0xff] %vm602, %v1585
      %1601 = vst.msk [vmem:[%s315 + $0x28] sm:$0xff] %vm602, %v1588
      %1602 = vst.msk [vmem:[%s315 + $0x30] sm:$0xff] %vm602, %v1591
      %1603 = vst.msk [vmem:[%s315 + $0x38] sm:$0xff] %vm602, %v1594
      %s1604 = smul.u32 8, %s20
      %p1605 = scmp.lt.s32.totalorder %s1604, 15
      %s1606 = scalar_select %p1605, %s1604, 15
      %s1607 = smul.addr %s1606, 8
      %s1608 = scalar_lea.vmem %s7, %s1607
      %s1609 = smul.u32 8, %s20
      %p1610 = scmp.lt.s32.totalorder %s1609, 15
      %s1611 = scalar_select %p1610, %s1609, 15
      %s1612 = smul.addr %s1611, 8
      %s1613 = scalar_lea.vmem %s8, %s1612
      // Predicated region
      $region49: #{tpu_custom_call.1} parent=47 // pred_check
        %p1614 = pneg %p190
      $region50: #{tpu_custom_call.1} parent=47 // pred_check_branch
        %1616 = sbr.rel (%p1614) target = $region52
      $region51: #{tpu_custom_call.1} parent=47 // pred_region
        %s1617 = smul.u32 8, %s20
      $region52: #{tpu_custom_call.1} parent=47 // pred_fallthru
        _
      // Predicated region
      $region53: #{tpu_custom_call.1} parent=47 // pred_check
        %p1618 = pneg %p216
      $region54: #{tpu_custom_call.1} parent=47 // pred_check_branch
        %1620 = sbr.rel (%p1618) target = $region56
      $region55: #{tpu_custom_call.1} parent=47 // pred_region
        %s1621 = smul.u32 8, %s20
      $region56: #{tpu_custom_call.1} parent=47 // pred_fallthru
        _
    $region48: #{tpu_custom_call.1} parent=5 // pred_fallthru
      _
    %p1622 = scmp.le.s32.totalorder 2, %s15
    // Predicated region
    $region57: #{tpu_custom_call.1} parent=5 // pred_check
      %p1623 = pneg %p1622
    $region58: #{tpu_custom_call.1} parent=5 // pred_check_branch
      %1625 = sbr.rel (%p1623) target = $region60
    $region59: #{tpu_custom_call.1} parent=5 // pred_region
      %s1626 = ssub.s32 %s15, 2
      // Predicated region
      $region61: #{tpu_custom_call.1} parent=59 // pred_check
        %p1627 = pneg %p196
      $region62: #{tpu_custom_call.1} parent=59 // pred_check_branch
        %1629 = sbr.rel (%p1627) target = $region64
      $region63: #{tpu_custom_call.1} parent=59 // pred_region
        %s1630 = smul.u32 8, %s21
        %p1631 = scmp.lt.s32.totalorder %s1630, 15
        %s1632 = scalar_select %p1631, %s1630, 15
        %s1633 = smul.addr %s1632, 8
        %s1634 = scalar_lea.vmem %s7, %s1633
      $region64: #{tpu_custom_call.1} parent=59 // pred_fallthru
        _
      // Predicated region
      $region65: #{tpu_custom_call.1} parent=59 // pred_check
        %p1635 = pneg %p222
      $region66: #{tpu_custom_call.1} parent=59 // pred_check_branch
        %1637 = sbr.rel (%p1635) target = $region68
      $region67: #{tpu_custom_call.1} parent=59 // pred_region
        %s1638 = smul.u32 8, %s21
        %p1639 = scmp.lt.s32.totalorder %s1638, 15
        %s1640 = scalar_select %p1639, %s1638, 15
        %s1641 = smul.addr %s1640, 8
        %s1642 = scalar_lea.vmem %s8, %s1641
      $region68: #{tpu_custom_call.1} parent=59 // pred_fallthru
        _
    $region60: #{tpu_custom_call.1} parent=5 // pred_fallthru
      _
  $region6: #{tpu_custom_call.1} parent=0 // loop_footer
    %s19 = sadd.s32 1, %s15
  $region7: #{tpu_custom_call.1} parent=0 // loop_footer_branch
    %14 = sbr.rel target = $region3
  $region8: #{tpu_custom_call.1} parent=0 // loop_exit
    _

</llo_original>
